<compile_context>
chip_gen: v7x
topology: tpu7x:2x2x1
jax: 0.10.0
libtpu: 0.0.40
codegen_flags: <defaults>
</compile_context>

<pallas_src>
import functools

import jax
import jax.numpy as jnp
from jax.experimental import pallas as pl
from jax.experimental.pallas import tpu as pltpu

KERNEL_SIZE = 3   # fixed receptive field per layer (standard WaveNet choice)
LANE = 128        # TPU lane width: activation channel padding target
SUBLANE = 8       # sublane granularity: length / input-channel padding target
_VMEM_BUDGET = 40 * 1024 * 1024   # target footprint; fits v7x's 64 MiB with headroom


def _round_up(x, m):
    return ((x + m - 1) // m) * m


def _fused_stack_kernel(x_ref, w0_ref, wr_ref, b_ref, o_ref, buf_a, buf_b, *,
                        dilations, tile_l, halo, seq_len):
    """All dilated-conv layers for one (batch, length-tile) grid point.

    x_ref  : (1, 1, ext, cin_p)  halo window of the input (auto-pipelined block)
    w0_ref : (K, cin_p, cp)      layer-0 weights (one (cin_p, cp) matrix per tap)
    wr_ref : (R, K*cp, cp)       layers >= 1 weights, taps stacked along the
                                 contraction dim (R = max(num_layers - 1, 1))
    b_ref  : (num_layers, 1, cp) f32 biases
    o_ref  : (1, tile_l, cp)     lane-dense output block
    buf_a/buf_b : (ext, cp) f32  VMEM ping-pong activation scratch
    """
    j = pl.program_id(1)
    ext = buf_a.shape[0]
    num_layers = len(dilations)
    mxu_dtype = w0_ref.dtype                     # bf16 by default, f32 opt-in

    # 'same' zero-padding mask, hoisted out of the layer loop: rows whose global
    # position lies outside [0, seq_len) must be exactly zero before the next layer
    # reads them.  (Interior rows of interior tiles are unaffected by the select.)
    pos = jax.lax.broadcasted_iota(jnp.int32, (ext, 1), 0) + (j * tile_l - halo)
    valid = jnp.logical_and(pos >= 0, pos < seq_len)

    bufs = (buf_a, buf_b)
    s = x_ref[0, 0].astype(jnp.float32)          # (ext, cin_p) activations in f32
    for layer, d in enumerate(dilations):        # static unroll over layers
        # Taps via XLU rotations (always aligned; the wrapped rows only land in the
        # per-layer dead band, never in the central tile_l rows).
        left = pltpu.roll(s, d, 0)               # left[r]  = s[r - d]
        right = pltpu.roll(s, ext - d, 0)        # right[r] = s[r + d]
        if layer == 0:
            acc = jnp.dot(left.astype(mxu_dtype), w0_ref[0],
                          preferred_element_type=jnp.float32)
            acc = acc + jnp.dot(s.astype(mxu_dtype), w0_ref[1],
                                preferred_element_type=jnp.float32)
            acc = acc + jnp.dot(right.astype(mxu_dtype), w0_ref[2],
                                preferred_element_type=jnp.float32)
        else:
            # Fold the 3 taps into one 3*cp-deep contraction (concat is at 128-lane
            # boundaries, so it is layout-cheap; fills the 256-deep MXU on v6e/v7x).
            lhs = jnp.concatenate([left, s, right], axis=1).astype(mxu_dtype)
            acc = jnp.dot(lhs, wr_ref[layer - 1],
                          preferred_element_type=jnp.float32)
        acc = acc + b_ref[layer]                 # (1, cp) f32 broadcast
        acc = jnp.maximum(acc, 0.0)
        if layer + 1 < num_layers:
            # Re-impose 'same' zero padding before the next layer reads it.
            acc = jnp.where(valid, acc, 0.0)
            dst = bufs[layer % 2]
            dst[...] = acc                       # f32 scratch: no bf16 rounding here
            s = dst[...]
        else:
            # Central rows are exact (halo >= sum(dilations)); out-of-range rows of
            # the last tile are sliced off by the wrapper, so no mask is needed.
            o_ref[0] = acc[halo:halo + tile_l, :].astype(o_ref.dtype)


def _pack_params(weights, biases, cin_p, cp, compute_dtype):
    """Pack per-layer (K, cin, cout) weights into padded, MXU-friendly stacks."""
    num_layers = len(weights)
    cin0, cout0 = weights[0].shape[1], weights[0].shape[2]
    w0 = jnp.zeros((KERNEL_SIZE, cin_p, cp), compute_dtype)
    w0 = w0.at[:, :cin0, :cout0].set(weights[0].astype(compute_dtype))
    r = max(num_layers - 1, 1)
    wr = jnp.zeros((r, KERNEL_SIZE, cp, cp), compute_dtype)
    for i in range(1, num_layers):
        ci, co = weights[i].shape[1], weights[i].shape[2]
        wr = wr.at[i - 1, :, :ci, :co].set(weights[i].astype(compute_dtype))
    wr = wr.reshape(r, KERNEL_SIZE * cp, cp)     # taps stacked along contraction dim
    b = jnp.zeros((num_layers, 1, cp), jnp.float32)
    for i, bias in enumerate(biases):
        b = b.at[i, 0, :bias.shape[0]].set(bias.astype(jnp.float32))
    return w0, wr, b


class DilatedConvBlock:
    """JAX/Pallas port of the WaveNet DilatedConvBlock (fused single-kernel forward)."""

    def __init__(self, in_channels, out_channels, num_layers, key,
                 compute_dtype=jnp.bfloat16, tile_l=None):
        self.in_channels = in_channels
        self.out_channels = out_channels
        self.num_layers = num_layers
        self.compute_dtype = compute_dtype
        self.tile_l = tile_l
        self.dilations = tuple(2 ** i for i in range(num_layers))
        self.cp = _round_up(out_channels, LANE)       # lane-dense activation width
        self.cin_p = _round_up(in_channels, SUBLANE)  # input pad: sublane-aligned only
        self.halo = _round_up(sum(self.dilations), SUBLANE)
        # TODO(synk): halo (= 2**num_layers - 1) grows exponentially with num_layers;
        #             for very deep stacks split the stack into groups of layers.

        self.weights, self.biases = [], []
        cin = in_channels
        for _ in range(num_layers):
            key, wk, bk = jax.random.split(key, 3)
            fan_in = cin * KERNEL_SIZE
            scale = 1.0 / float(fan_in) ** 0.5
            w = jax.random.uniform(wk, (KERNEL_SIZE, cin, out_channels),
                                   jnp.float32, -scale, scale)
            b = jax.random.uniform(bk, (out_channels,), jnp.float32, -scale, scale)
            self.weights.append(w)
            self.biases.append(b)
            cin = out_channels

        # Pack ONCE (not per forward): padded, tap-folded, compute-dtype stacks.
        self.w0_stack, self.wr_stack, self.b_stack = _pack_params(
            self.weights, self.biases, self.cin_p, self.cp, compute_dtype)

    # ---- sizing ------------------------------------------------------------
    def _vmem_footprint(self, tile_l, out_bpe=4):
        ext = tile_l + 2 * self.halo
        bpe = jnp.dtype(self.compute_dtype).itemsize
        cp, nl = self.cp, self.num_layers
        fp = 0
        fp += 2 * ext * _round_up(self.cin_p, LANE) * bpe           # input window (x2 bufs)
        fp += 2 * KERNEL_SIZE * self.cin_p * cp * bpe               # layer-0 weights
        fp += 2 * max(nl - 1, 1) * KERNEL_SIZE * cp * cp * bpe      # folded weights
        fp += 2 * nl * SUBLANE * cp * 4                             # biases (f32)
        fp += 2 * tile_l * cp * out_bpe                             # output blocks
        fp += 2 * ext * cp * 4                                      # f32 ping-pong scratch
        return fp
        # TODO(synk): weight/bias blocks have constant index maps; single-buffering
        #             them (pipeline_mode=pl.Buffered(1)) would halve their share.

    def _pick_tile_l(self, batch, seq_len):
        if self.tile_l is not None:
            return max(SUBLANE, _round_up(self.tile_l, SUBLANE))
        t = max(512, 4 * self.halo)               # amortize grid overhead + halo recompute
        t = min(t, _round_up(seq_len, SUBLANE))
        if batch == 1 and seq_len > SUBLANE:
            # >= 2 length tiles so both v7x TensorCores get work when B == 1.
            t = min(t, _round_up(-(-seq_len // 2), SUBLANE))
        t = max(SUBLANE, _round_up(t, SUBLANE))
        while t > 4 * SUBLANE and self._vmem_footprint(t) > _VMEM_BUDGET:
            t = max(4 * SUBLANE, _round_up(t // 2, SUBLANE))
        return t

    # ---- forward -----------------------------------------------------------
    def __call__(self, x_ncl):
        # x_ncl: (B, C_in, L) -- PyTorch Conv1d layout.
        x_nlc = jnp.transpose(x_ncl, (0, 2, 1))
        y_nlc = self.forward_nlc(x_nlc)
        return jnp.transpose(y_nlc, (0, 2, 1))

    def forward_nlc(self, x_nlc):
        batch, seq_len, cin = x_nlc.shape
        assert cin == self.in_channels
        cp, cin_p, halo, cdt = self.cp, self.cin_p, self.halo, self.compute_dtype

        tile_l = self._pick_tile_l(batch, seq_len)
        ext = tile_l + 2 * halo
        num_tiles = -(-seq_len // tile_l)
        l_pad = num_tiles * tile_l

        # One pad for the whole stack: halo + length round-up + (small) channel pad.
        x = x_nlc.astype(cdt)
        x = jnp.pad(x, ((0, 0), (halo, halo + l_pad - seq_len), (0, cin_p - cin)))
        # Pre-materialize the overlapping halo windows so the per-tile fetch is a
        # plain BlockSpec block (windows overlap by 2*halo, which block indexing
        # alone cannot express) and Pallas prefetches it under the previous tile's
        # compute.  The input is only cin_p-wide, so the duplication is cheap.
        row_idx = (jnp.arange(num_tiles, dtype=jnp.int32)[:, None] * tile_l
                   + jnp.arange(ext, dtype=jnp.int32)[None, :])
        x_win = jnp.take(x, row_idx, axis=1)      # (B, num_tiles, ext, cin_p)

        out_dtype = x_nlc.dtype
        nl = self.num_layers
        r = self.wr_stack.shape[0]
        kernel = functools.partial(_fused_stack_kernel, dilations=self.dilations,
                                   tile_l=tile_l, halo=halo, seq_len=seq_len)
        footprint = self._vmem_footprint(tile_l, jnp.dtype(out_dtype).itemsize)
        vmem_limit = int(min(max(32 * 1024 * 1024, footprint + 8 * 1024 * 1024),
                             64 * 1024 * 1024))

        out = pl.pallas_call(
            kernel,
            out_shape=jax.ShapeDtypeStruct((batch, l_pad, cp), out_dtype),
            grid_spec=pltpu.PrefetchScalarGridSpec(
                num_scalar_prefetch=0,
                grid=(batch, num_tiles),
                in_specs=[
                    pl.BlockSpec((1, 1, ext, cin_p), lambda b, j: (b, j, 0, 0)),
                    pl.BlockSpec((KERNEL_SIZE, cin_p, cp), lambda b, j: (0, 0, 0)),
                    pl.BlockSpec((r, KERNEL_SIZE * cp, cp), lambda b, j: (0, 0, 0)),
                    pl.BlockSpec((nl, 1, cp), lambda b, j: (0, 0, 0)),
                ],
                out_specs=pl.BlockSpec((1, tile_l, cp), lambda b, j: (b, j, 0)),
                scratch_shapes=[pltpu.VMEM((ext, cp), jnp.float32),   # ping
                                pltpu.VMEM((ext, cp), jnp.float32)],  # pong
            ),
            compiler_params=pltpu.CompilerParams(
                dimension_semantics=("parallel", "parallel"),
                vmem_limit_bytes=vmem_limit),
        )(x_win, self.w0_stack, self.wr_stack, self.b_stack)

        if l_pad != seq_len or cp != self.out_channels:
            out = out[:, :seq_len, :self.out_channels]
        return out


def _reference_forward(weights, biases, x_ncl):
    """Pure-JAX (lax.conv) reference for correctness checking."""
    x = x_ncl
    for i, (w, b) in enumerate(zip(weights, biases)):
        d = 2 ** i
        w_oiw = jnp.transpose(w, (2, 1, 0))       # (Cout, Cin, K)
        y = jax.lax.conv_general_dilated(
            x, w_oiw, window_strides=(1,), padding=[(d, d)], rhs_dilation=(d,),
            dimension_numbers=("NCH", "OIH", "NCH"),
            precision=jax.lax.Precision.HIGHEST)
        x = jnp.maximum(y + b[None, :, None], 0.0)
    return x


if __name__ == "__main__":
    key = jax.random.PRNGKey(0)

    # --- Test 1: f32 MXU path, single length tile per batch -------------------
    key, xk, pk = jax.random.split(key, 3)
    B, C_in, C_out, L, nl = 2, 4, 8, 16, 3
    x = jax.random.normal(xk, (B, C_in, L), dtype=jnp.float32)
    blk_f32 = DilatedConvBlock(C_in, C_out, nl, pk, compute_dtype=jnp.float32)
    out = jax.block_until_ready(blk_f32(x))
    ref = _reference_forward(blk_f32.weights, blk_f32.biases, x)
    assert out.shape == (B, C_out, L), out.shape
    err = float(jnp.max(jnp.abs(out - ref)))
    assert jnp.allclose(out, ref, atol=5e-2, rtol=5e-2), f"f32 mismatch, max err {err}"

    # --- Test 2: f32, explicit small tile_l -> multiple tiles + remainder -----
    key, xk2, pk2 = jax.random.split(key, 3)
    B2, Ci2, Co2, L2, nl2 = 1, 6, 10, 40, 4
    x2 = jax.random.normal(xk2, (B2, Ci2, L2), dtype=jnp.float32)
    blk2 = DilatedConvBlock(Ci2, Co2, nl2, pk2, compute_dtype=jnp.float32, tile_l=16)
    out2 = jax.block_until_ready(blk2(x2))
    ref2 = _reference_forward(blk2.weights, blk2.biases, x2)
    assert out2.shape == (B2, Co2, L2), out2.shape
    err2 = float(jnp.max(jnp.abs(out2 - ref2)))
    assert jnp.allclose(out2, ref2, atol=5e-2, rtol=5e-2), f"tiled f32 mismatch {err2}"

    # --- Test 3: default bf16 MXU path + auto tile split (B == 1) -------------
    blk3 = DilatedConvBlock(Ci2, Co2, nl2, pk2)   # same key -> same weights as blk2
    out3 = jax.block_until_ready(blk3(x2))
    assert out3.shape == (B2, Co2, L2), out3.shape
    err3 = float(jnp.max(jnp.abs(out3 - ref2)))
    assert jnp.allclose(out3, ref2, atol=1e-1, rtol=1e-1), f"bf16 mismatch {err3}"

    print("KERNEL_OK")
</pallas_src>

<mosaic_0001>
module attributes {stable_mosaic.version = 11 : i64} {
  func.func @_fused_stack_kernel(%arg0: i32, %arg1: i32, %arg2: memref<1x1x32x8xf32, #tpu.memory_space<vmem>>, %arg3: memref<3x8x128xf32, #tpu.memory_space<vmem>>, %arg4: memref<2x384x128xf32, #tpu.memory_space<vmem>>, %arg5: memref<3x1x128xf32, #tpu.memory_space<vmem>>, %arg6: memref<1x16x128xf32, #tpu.memory_space<vmem>>, %arg7: memref<32x128xf32, #tpu.memory_space<vmem>>, %arg8: memref<32x128xf32, #tpu.memory_space<vmem>>) attributes {dimension_semantics = [#tpu.dimension_semantics<parallel>, #tpu.dimension_semantics<parallel>], iteration_bounds = array<i64: 2, 1>, scalar_prefetch = 0 : i64, scratch_operands = 2 : i64, tpu.core_type = #tpu.core_type<tc>, window_params = [{transform_indices = @transform_0, window_bounds = array<i64: 1, 1, 32, 8>}, {pipeline_mode = #tpu.pipeline_mode<synchronous>, transform_indices = @transform_1, window_bounds = array<i64: 3, 8, 128>}, {pipeline_mode = #tpu.pipeline_mode<synchronous>, transform_indices = @transform_2, window_bounds = array<i64: 2, 384, 128>}, {pipeline_mode = #tpu.pipeline_mode<synchronous>, transform_indices = @transform_3, window_bounds = array<i64: 3, 1, 128>}, {transform_indices = @transform_4, window_bounds = array<i64: 1, 16, 128>}]} {
    %0 = tpu.iota {dimensions = array<i32: 0>} : vector<32x1xi32>
    %c16_i32 = arith.constant 16 : i32
    %1 = arith.muli %arg1, %c16_i32 : i32
    %c8_i32 = arith.constant 8 : i32
    %2 = arith.subi %1, %c8_i32 : i32
    %3 = vector.broadcast %2 : i32 to vector<32x1xi32>
    %4 = arith.addi %0, %3 : vector<32x1xi32>
    %c0_i32 = arith.constant 0 : i32
    %5 = vector.broadcast %c0_i32 : i32 to vector<32x1xi32>
    %6 = arith.cmpi sge, %4, %5 : vector<32x1xi32>
    %c16_i32_0 = arith.constant 16 : i32
    %7 = vector.broadcast %c16_i32_0 : i32 to vector<32x1xi32>
    %8 = arith.cmpi slt, %4, %7 : vector<32x1xi32>
    %9 = arith.andi %6, %8 : vector<32x1xi1>
    %c0 = arith.constant 0 : index
    %c0_1 = arith.constant 0 : index
    %c0_2 = arith.constant 0 : index
    %c0_3 = arith.constant 0 : index
    %10 = vector.load %arg2[%c0, %c0_1, %c0_2, %c0_3] : memref<1x1x32x8xf32, #tpu.memory_space<vmem>>, vector<1x1x32x8xf32>
    %11 = vector.shape_cast %10 : vector<1x1x32x8xf32> to vector<32x8xf32>
    %c1_i32 = arith.constant 1 : i32
    %12 = tpu.dynamic_rotate %11 by %c1_i32 dim 0 : vector<32x8xf32>, i32 -> vector<32x8xf32>
    %c31_i32 = arith.constant 31 : i32
    %13 = tpu.dynamic_rotate %11 by %c31_i32 dim 0 : vector<32x8xf32>, i32 -> vector<32x8xf32>
    %c0_4 = arith.constant 0 : index
    %c0_5 = arith.constant 0 : index
    %c0_6 = arith.constant 0 : index
    %14 = vector.load %arg3[%c0_4, %c0_5, %c0_6] : memref<3x8x128xf32, #tpu.memory_space<vmem>>, vector<1x8x128xf32>
    %15 = vector.shape_cast %14 : vector<1x8x128xf32> to vector<8x128xf32>
    %cst = arith.constant dense<0.000000e+00> : vector<32x128xf32>
    %16 = tpu.matmul %12, %15, %cst {dimension_numbers = #tpu.dot_dimension_numbers<[1], [0], [0], [1], [0, 0, 1, 1], [], []>} : vector<32x8xf32>, vector<8x128xf32>, vector<32x128xf32> -> vector<32x128xf32>
    %c1 = arith.constant 1 : index
    %c0_7 = arith.constant 0 : index
    %c0_8 = arith.constant 0 : index
    %17 = vector.load %arg3[%c1, %c0_7, %c0_8] : memref<3x8x128xf32, #tpu.memory_space<vmem>>, vector<1x8x128xf32>
    %18 = vector.shape_cast %17 : vector<1x8x128xf32> to vector<8x128xf32>
    %cst_9 = arith.constant dense<0.000000e+00> : vector<32x128xf32>
    %19 = tpu.matmul %11, %18, %cst_9 {dimension_numbers = #tpu.dot_dimension_numbers<[1], [0], [0], [1], [0, 0, 1, 1], [], []>} : vector<32x8xf32>, vector<8x128xf32>, vector<32x128xf32> -> vector<32x128xf32>
    %20 = arith.addf %16, %19 : vector<32x128xf32>
    %c2 = arith.constant 2 : index
    %c0_10 = arith.constant 0 : index
    %c0_11 = arith.constant 0 : index
    %21 = vector.load %arg3[%c2, %c0_10, %c0_11] : memref<3x8x128xf32, #tpu.memory_space<vmem>>, vector<1x8x128xf32>
    %22 = vector.shape_cast %21 : vector<1x8x128xf32> to vector<8x128xf32>
    %cst_12 = arith.constant dense<0.000000e+00> : vector<32x128xf32>
    %23 = tpu.matmul %13, %22, %cst_12 {dimension_numbers = #tpu.dot_dimension_numbers<[1], [0], [0], [1], [0, 0, 1, 1], [], []>} : vector<32x8xf32>, vector<8x128xf32>, vector<32x128xf32> -> vector<32x128xf32>
    %24 = arith.addf %20, %23 : vector<32x128xf32>
    %c0_13 = arith.constant 0 : index
    %c0_14 = arith.constant 0 : index
    %c0_15 = arith.constant 0 : index
    %25 = vector.load %arg5[%c0_13, %c0_14, %c0_15] : memref<3x1x128xf32, #tpu.memory_space<vmem>>, vector<1x1x128xf32>
    %26 = vector.shape_cast %25 : vector<1x1x128xf32> to vector<1x128xf32>
    %27 = vector.broadcast %26 : vector<1x128xf32> to vector<32x128xf32>
    %28 = arith.addf %24, %27 : vector<32x128xf32>
    %cst_16 = arith.constant 0.000000e+00 : f32
    %29 = vector.broadcast %cst_16 : f32 to vector<32x128xf32>
    %30 = arith.maximumf %28, %29 : vector<32x128xf32>
    %cst_17 = arith.constant 0.000000e+00 : f32
    %31 = vector.shape_cast %9 : vector<32x1xi1> to vector<32x1xi1>
    %32 = vector.broadcast %31 : vector<32x1xi1> to vector<32x128xi1>
    %33 = vector.broadcast %cst_17 : f32 to vector<32x128xf32>
    %34 = arith.select %32, %30, %33 : vector<32x128xi1>, vector<32x128xf32>
    %c0_18 = arith.constant 0 : index
    %c0_19 = arith.constant 0 : index
    %35 = vector.load %arg7[%c0_18, %c0_19] : memref<32x128xf32, #tpu.memory_space<vmem>>, vector<32x128xf32>
    tpu.vector_store %arg7[%c0_18, %c0_19], %34 {strides = array<i32>} : memref<32x128xf32, #tpu.memory_space<vmem>>, vector<32x128xf32>,
    %c0_20 = arith.constant 0 : index
    %c0_21 = arith.constant 0 : index
    %36 = vector.load %arg7[%c0_20, %c0_21] : memref<32x128xf32, #tpu.memory_space<vmem>>, vector<32x128xf32>
    %c2_i32 = arith.constant 2 : i32
    %37 = tpu.dynamic_rotate %36 by %c2_i32 dim 0 : vector<32x128xf32>, i32 -> vector<32x128xf32>
    %c30_i32 = arith.constant 30 : i32
    %38 = tpu.dynamic_rotate %36 by %c30_i32 dim 0 : vector<32x128xf32>, i32 -> vector<32x128xf32>
    %39 = tpu.concatenate %37, %36, %38 in 1 : vector<32x128xf32>, vector<32x128xf32>, vector<32x128xf32> -> vector<32x384xf32>
    %c0_22 = arith.constant 0 : index
    %c0_23 = arith.constant 0 : index
    %c0_24 = arith.constant 0 : index
    %40 = vector.load %arg4[%c0_22, %c0_23, %c0_24] : memref<2x384x128xf32, #tpu.memory_space<vmem>>, vector<1x384x128xf32>
    %41 = vector.shape_cast %40 : vector<1x384x128xf32> to vector<384x128xf32>
    %cst_25 = arith.constant dense<0.000000e+00> : vector<32x128xf32>
    %42 = tpu.matmul %39, %41, %cst_25 {dimension_numbers = #tpu.dot_dimension_numbers<[1], [0], [0], [1], [0, 0, 1, 1], [], []>} : vector<32x384xf32>, vector<384x128xf32>, vector<32x128xf32> -> vector<32x128xf32>
    %c1_26 = arith.constant 1 : index
    %c0_27 = arith.constant 0 : index
    %c0_28 = arith.constant 0 : index
    %43 = vector.load %arg5[%c1_26, %c0_27, %c0_28] : memref<3x1x128xf32, #tpu.memory_space<vmem>>, vector<1x1x128xf32>
    %44 = vector.shape_cast %43 : vector<1x1x128xf32> to vector<1x128xf32>
    %45 = vector.broadcast %44 : vector<1x128xf32> to vector<32x128xf32>
    %46 = arith.addf %42, %45 : vector<32x128xf32>
    %cst_29 = arith.constant 0.000000e+00 : f32
    %47 = vector.broadcast %cst_29 : f32 to vector<32x128xf32>
    %48 = arith.maximumf %46, %47 : vector<32x128xf32>
    %cst_30 = arith.constant 0.000000e+00 : f32
    %49 = vector.shape_cast %9 : vector<32x1xi1> to vector<32x1xi1>
    %50 = vector.broadcast %49 : vector<32x1xi1> to vector<32x128xi1>
    %51 = vector.broadcast %cst_30 : f32 to vector<32x128xf32>
    %52 = arith.select %50, %48, %51 : vector<32x128xi1>, vector<32x128xf32>
    %c0_31 = arith.constant 0 : index
    %c0_32 = arith.constant 0 : index
    %53 = vector.load %arg8[%c0_31, %c0_32] : memref<32x128xf32, #tpu.memory_space<vmem>>, vector<32x128xf32>
    tpu.vector_store %arg8[%c0_31, %c0_32], %52 {strides = array<i32>} : memref<32x128xf32, #tpu.memory_space<vmem>>, vector<32x128xf32>,
    %c0_33 = arith.constant 0 : index
    %c0_34 = arith.constant 0 : index
    %54 = vector.load %arg8[%c0_33, %c0_34] : memref<32x128xf32, #tpu.memory_space<vmem>>, vector<32x128xf32>
    %c4_i32 = arith.constant 4 : i32
    %55 = tpu.dynamic_rotate %54 by %c4_i32 dim 0 : vector<32x128xf32>, i32 -> vector<32x128xf32>
    %c28_i32 = arith.constant 28 : i32
    %56 = tpu.dynamic_rotate %54 by %c28_i32 dim 0 : vector<32x128xf32>, i32 -> vector<32x128xf32>
    %57 = tpu.concatenate %55, %54, %56 in 1 : vector<32x128xf32>, vector<32x128xf32>, vector<32x128xf32> -> vector<32x384xf32>
    %c1_35 = arith.constant 1 : index
    %c0_36 = arith.constant 0 : index
    %c0_37 = arith.constant 0 : index
    %58 = vector.load %arg4[%c1_35, %c0_36, %c0_37] : memref<2x384x128xf32, #tpu.memory_space<vmem>>, vector<1x384x128xf32>
    %59 = vector.shape_cast %58 : vector<1x384x128xf32> to vector<384x128xf32>
    %cst_38 = arith.constant dense<0.000000e+00> : vector<32x128xf32>
    %60 = tpu.matmul %57, %59, %cst_38 {dimension_numbers = #tpu.dot_dimension_numbers<[1], [0], [0], [1], [0, 0, 1, 1], [], []>} : vector<32x384xf32>, vector<384x128xf32>, vector<32x128xf32> -> vector<32x128xf32>
    %c2_39 = arith.constant 2 : index
    %c0_40 = arith.constant 0 : index
    %c0_41 = arith.constant 0 : index
    %61 = vector.load %arg5[%c2_39, %c0_40, %c0_41] : memref<3x1x128xf32, #tpu.memory_space<vmem>>, vector<1x1x128xf32>
    %62 = vector.shape_cast %61 : vector<1x1x128xf32> to vector<1x128xf32>
    %63 = vector.broadcast %62 : vector<1x128xf32> to vector<32x128xf32>
    %64 = arith.addf %60, %63 : vector<32x128xf32>
    %cst_42 = arith.constant 0.000000e+00 : f32
    %65 = vector.broadcast %cst_42 : f32 to vector<32x128xf32>
    %66 = arith.maximumf %64, %65 : vector<32x128xf32>
    %67 = vector.extract_strided_slice %66 {offsets = [8, 0], sizes = [16, 128], strides = [1, 1]} : vector<32x128xf32> to vector<16x128xf32>
    %c0_43 = arith.constant 0 : index
    %c0_44 = arith.constant 0 : index
    %c0_45 = arith.constant 0 : index
    %68 = vector.load %arg6[%c0_43, %c0_44, %c0_45] : memref<1x16x128xf32, #tpu.memory_space<vmem>>, vector<1x16x128xf32>
    %69 = vector.shape_cast %68 : vector<1x16x128xf32> to vector<16x128xf32>
    %70 = vector.shape_cast %67 : vector<16x128xf32> to vector<1x16x128xf32>
    tpu.vector_store %arg6[%c0_43, %c0_44, %c0_45], %70 {strides = array<i32>} : memref<1x16x128xf32, #tpu.memory_space<vmem>>, vector<1x16x128xf32>,
    return
  }
  func.func @transform_0(%arg0: i32, %arg1: i32) -> (i32, i32, i32, i32) {
    %c0_i32 = arith.constant 0 : i32
    %c0_i32_0 = arith.constant 0 : i32
    %c0_i32_1 = arith.constant 0 : i32
    return %arg0, %arg1, %c0_i32, %c0_i32_0 : i32, i32, i32, i32
  }
  func.func @transform_1(%arg0: i32, %arg1: i32) -> (i32, i32, i32) {
    %c0_i32 = arith.constant 0 : i32
    %c0_i32_0 = arith.constant 0 : i32
    %c0_i32_1 = arith.constant 0 : i32
    %c0_i32_2 = arith.constant 0 : i32
    return %c0_i32, %c0_i32_0, %c0_i32_1 : i32, i32, i32
  }
  func.func @transform_2(%arg0: i32, %arg1: i32) -> (i32, i32, i32) {
    %c0_i32 = arith.constant 0 : i32
    %c0_i32_0 = arith.constant 0 : i32
    %c0_i32_1 = arith.constant 0 : i32
    %c0_i32_2 = arith.constant 0 : i32
    return %c0_i32, %c0_i32_0, %c0_i32_1 : i32, i32, i32
  }
  func.func @transform_3(%arg0: i32, %arg1: i32) -> (i32, i32, i32) {
    %c0_i32 = arith.constant 0 : i32
    %c0_i32_0 = arith.constant 0 : i32
    %c0_i32_1 = arith.constant 0 : i32
    %c0_i32_2 = arith.constant 0 : i32
    return %c0_i32, %c0_i32_0, %c0_i32_1 : i32, i32, i32
  }
  func.func @transform_4(%arg0: i32, %arg1: i32) -> (i32, i32, i32) {
    %c0_i32 = arith.constant 0 : i32
    %c0_i32_0 = arith.constant 0 : i32
    return %arg0, %arg1, %c0_i32 : i32, i32, i32
  }
}

</mosaic_0001>

<llo_original>
// kernel: tpu_custom_call.1
$region0: #{tpu_custom_call.1}
  #allocation0 [shape = 'u32[]', space=smem, size = 0x4, offset = 0x4, fixed_abs, tag = 'smem constant byte address 0x4 - core index']
  #allocation1 [shape = 'u32[144,128]{1,0:T(1,128)}', space=vmem, size = 0x12000, scoped, tag = 'internal scratch']
  #allocation2 [shape = 'f32[32,128]{1,0:T(8,128)}', space=vmem, size = 0x4000, scoped, tag = 'scratch operand']
  #allocation3 [shape = 'f32[32,128]{1,0:T(8,128)}', space=vmem, size = 0x4000, scoped, tag = 'scratch operand']
  %s0 = inlined_call_operand.vmem [shape: f32[2,1,32,8], index: 0, kind: input, shape index: {}]
  %s1 = inlined_call_operand.vmem [shape: f32[3,8,128], index: 1, kind: input, shape index: {}]
  %s2 = inlined_call_operand.hbm [shape: f32[2,384,128], index: 2, kind: input, shape index: {}]
  %s3 = inlined_call_operand.vmem [shape: f32[3,1,128], index: 3, kind: input, shape index: {}]
  %s4 = inlined_call_operand.hbm [shape: f32[2,16,128], index: 4, kind: output, shape index: {}]
  %s5 = sld [smem:[#allocation0]]
  $region53: #{tpu_custom_call.1} parent=0
    _
  %s7 = ssub.s32 1, %s5
  %s8 = scalar_select 0, %s7, %s5
  $region1: #{tpu_custom_call.1} parent=0
    #allocation4 [shape = 'u8[393216]{0}', space=vmem, size = 0x60000, scoped, tag = 'input window, operand 2, single buffered']
    #allocation5 [shape = 's32[2]{0}', space=sflag, size = 0x8, scoped, tag = 'scoped memory for tpu_custom_call.1']
    #allocation6 [shape = 's32[2]{0}', space=sflag, size = 0x8, scoped, tag = 'scoped memory for tpu_custom_call.1']
    #allocation7 [shape = 'u8[16384]{0}', space=vmem, size = 0x4000, scoped, tag = 'output window, operand 0']
    %9 = vsyncpa [#allocation5], 0
    %10 = vsyncpa [#allocation6], 0
    %s11 = scalar_lea.sflag [#allocation6], 1
    %12 = vsyncpa %s11, 0
    loop: start=0, step=1, limit=4
    $region2: #{tpu_custom_call.1} parent=1 // loop_pre_header
      _
    $region3: #{tpu_custom_call.1} parent=1 // loop_header
      %s14 = sphi 0, %s18
      %p15 = scmp.ge.s32.totalorder %s14, 4
      %s21 = sphi 0, %s33
      %s22 = sphi 0, %s29
      %s23 = sphi 0, %s21
      %s24 = sphi 0, %s22
      %s25 = sphi 0, %s23
      %s26 = sphi 0, %s24
      %s38 = sphi 0, %s40
      %s41 = sphi 0, %s38
      %s42 = sphi 0, %s41
      %s58 = sphi 0, %s42
      %s62 = sphi 0, %s62
      %s64 = sphi 0, %s62
      %s65 = sphi 0, %s64
      %s79 = sphi 0, %s65
      %s83 = sphi 0, %s83
      %s85 = sphi 0, %s83
      %s86 = sphi 0, %s85
      %s100 = sphi 0, %s86
      %s104 = sphi 0, %s104
      %s106 = sphi 0, %s104
      %s107 = sphi 0, %s106
      %s121 = sphi 0, %s107
      %s129 = sphi 0, %s131
      %s132 = sphi 0, %s129
      %s133 = sphi 0, %s132
      %s149 = sphi 0, %s133
    $region4: #{tpu_custom_call.1} parent=1 // loop_header_branch
      %17 = sbr.rel (%p15) target = $region8
    $region5: #{tpu_custom_call.1} parent=1 // loop_body
      %s19 = ssub.s32 %s14, 1
      %s20 = ssub.s32 %s14, 2
      %s27 = sadd.s32 1, %s22
      %p28 = scmp.ge.s32.totalorder %s27, 1
      %s29 = scalar_select %p28, 0, %s27
      %s30 = sadd.s32 1, %s21
      %s31 = scalar_select %p28, %s30, %s21
      %p32 = scmp.ge.s32.totalorder %s31, 2
      %s33 = scalar_select %p32, 0, %s31
      %s34 = ssub.s32 %s21, %s33
      %s35 = ssub.s32 %s22, %s29
      %s36 = sor.u32 %s34, %s35
      %p37 = scmp.eq.s32.totalorder %s36, 0
      %s39 = sadd.s32 %s38, 1
      %s40 = scalar_select %p37, %s38, %s39
      %p43 = pneg %p37
      %p44 = scmp.eq.s32.totalorder %s14, 1
      %p45 = por %p43, %p44
      %p46 = scmp.ne.s32.totalorder %s38, %s41
      %p47 = scmp.eq.s32.totalorder %s14, 0
      %p48 = por %p46, %p47
      %p49 = scmp.ne.s32.totalorder %s38, %s41
      %p50 = scmp.eq.s32.totalorder %s19, 1
      %p51 = por %p49, %p50
      %p52 = scmp.ne.s32.totalorder %s41, %s42
      %p53 = scmp.eq.s32.totalorder %s19, 0
      %p54 = por %p52, %p53
      %p55 = scmp.ne.s32.totalorder %s41, %s42
      %p56 = scmp.eq.s32.totalorder %s20, 1
      %p57 = por %p55, %p56
      %p59 = scmp.ne.s32.totalorder %s42, %s58
      %p60 = scmp.eq.s32.totalorder %s20, 0
      %p61 = por %p59, %p60
      %s63 = sadd.s32 %s62, 1
      %p66 = scmp.eq.s32.totalorder %s14, 1
      %p67 = scmp.ne.s32.totalorder %s62, %s64
      %p68 = scmp.eq.s32.totalorder %s14, 0
      %p69 = por %p67, %p68
      %p70 = scmp.ne.s32.totalorder %s62, %s64
      %p71 = scmp.eq.s32.totalorder %s19, 1
      %p72 = por %p70, %p71
      %p73 = scmp.ne.s32.totalorder %s64, %s65
      %p74 = scmp.eq.s32.totalorder %s19, 0
      %p75 = por %p73, %p74
      %p76 = scmp.ne.s32.totalorder %s64, %s65
      %p77 = scmp.eq.s32.totalorder %s20, 1
      %p78 = por %p76, %p77
      %p80 = scmp.ne.s32.totalorder %s65, %s79
      %p81 = scmp.eq.s32.totalorder %s20, 0
      %p82 = por %p80, %p81
      %s84 = sadd.s32 %s83, 1
      %p87 = scmp.eq.s32.totalorder %s14, 1
      %p88 = scmp.ne.s32.totalorder %s83, %s85
      %p89 = scmp.eq.s32.totalorder %s14, 0
      %p90 = por %p88, %p89
      %p91 = scmp.ne.s32.totalorder %s83, %s85
      %p92 = scmp.eq.s32.totalorder %s19, 1
      %p93 = por %p91, %p92
      %p94 = scmp.ne.s32.totalorder %s85, %s86
      %p95 = scmp.eq.s32.totalorder %s19, 0
      %p96 = por %p94, %p95
      %p97 = scmp.ne.s32.totalorder %s85, %s86
      %p98 = scmp.eq.s32.totalorder %s20, 1
      %p99 = por %p97, %p98
      %p101 = scmp.ne.s32.totalorder %s86, %s100
      %p102 = scmp.eq.s32.totalorder %s20, 0
      %p103 = por %p101, %p102
      %s105 = sadd.s32 %s104, 1
      %p108 = scmp.eq.s32.totalorder %s14, 1
      %p109 = scmp.ne.s32.totalorder %s104, %s106
      %p110 = scmp.eq.s32.totalorder %s14, 0
      %p111 = por %p109, %p110
      %p112 = scmp.ne.s32.totalorder %s104, %s106
      %p113 = scmp.eq.s32.totalorder %s19, 1
      %p114 = por %p112, %p113
      %p115 = scmp.ne.s32.totalorder %s106, %s107
      %p116 = scmp.eq.s32.totalorder %s19, 0
      %p117 = por %p115, %p116
      %p118 = scmp.ne.s32.totalorder %s106, %s107
      %p119 = scmp.eq.s32.totalorder %s20, 1
      %p120 = por %p118, %p119
      %p122 = scmp.ne.s32.totalorder %s107, %s121
      %p123 = scmp.eq.s32.totalorder %s20, 0
      %p124 = por %p122, %p123
      %s125 = ssub.s32 %s21, %s33
      %s126 = ssub.s32 %s22, %s29
      %s127 = sor.u32 %s125, %s126
      %p128 = scmp.eq.s32.totalorder %s127, 0
      %s130 = sadd.s32 %s129, 1
      %s131 = scalar_select %p128, %s129, %s130
      %p134 = pneg %p128
      %p135 = scmp.eq.s32.totalorder %s14, 1
      %p136 = por %p134, %p135
      %p137 = scmp.ne.s32.totalorder %s129, %s132
      %p138 = scmp.eq.s32.totalorder %s14, 0
      %p139 = por %p137, %p138
      %p140 = scmp.ne.s32.totalorder %s129, %s132
      %p141 = scmp.eq.s32.totalorder %s19, 1
      %p142 = por %p140, %p141
      %p143 = scmp.ne.s32.totalorder %s132, %s133
      %p144 = scmp.eq.s32.totalorder %s19, 0
      %p145 = por %p143, %p144
      %p146 = scmp.ne.s32.totalorder %s132, %s133
      %p147 = scmp.eq.s32.totalorder %s20, 1
      %p148 = por %p146, %p147
      %p150 = scmp.ne.s32.totalorder %s133, %s149
      %p151 = scmp.eq.s32.totalorder %s20, 0
      %p152 = por %p150, %p151
      %p153 = scmp.le.s32.totalorder 1, %s14
      %p154 = scmp.lt.s32.totalorder %s14, 3
      %p155 = pnand %p153, %p154
      %p156 = pneg %p155
      // Predicated region
      $region9: #{tpu_custom_call.1} parent=5 // pred_check
        _
      $region10: #{tpu_custom_call.1} parent=5 // pred_check_branch
        %158 = sbr.rel (%p155) target = $region12
      $region11: #{tpu_custom_call.1} parent=5 // pred_region
        %s159 = ssub.s32 %s14, 1
        // Predicated region
        $region13: #{tpu_custom_call.1} parent=11 // pred_check
          %p160 = pneg %p75
        $region14: #{tpu_custom_call.1} parent=11 // pred_check_branch
          %162 = sbr.rel (%p160) target = $region16
        $region15: #{tpu_custom_call.1} parent=11 // pred_region
          _
        $region16: #{tpu_custom_call.1} parent=11 // pred_fallthru
          _
        // Predicated region
        $region17: #{tpu_custom_call.1} parent=11 // pred_check
          %p163 = pneg %p96
        $region18: #{tpu_custom_call.1} parent=11 // pred_check_branch
          %165 = sbr.rel (%p163) target = $region20
        $region19: #{tpu_custom_call.1} parent=11 // pred_region
          %s167 = ssub.s32 12288, 12288
          %168 = vsyncadd [#allocation5], %s167
          %s169 = sshll.u32 [#allocation4], 4
          %s170 = int_to_ptr.vmem [resolvable:$true] %s169
          %175 = dma.hbm_to_vmem [thread:$0]  %s2, 12288, %s170, [#allocation5], 128, 128, 8
        $region20: #{tpu_custom_call.1} parent=11 // pred_fallthru
          _
        // Predicated region
        $region21: #{tpu_custom_call.1} parent=11 // pred_check
          %p176 = pneg %p117
        $region22: #{tpu_custom_call.1} parent=11 // pred_check_branch
          %178 = sbr.rel (%p176) target = $region24
        $region23: #{tpu_custom_call.1} parent=11 // pred_region
          _
        $region24: #{tpu_custom_call.1} parent=11 // pred_fallthru
          _
      $region12: #{tpu_custom_call.1} parent=5 // pred_fallthru
        _
      %p179 = scmp.lt.s32.totalorder %s14, 2
      // Predicated region
      $region25: #{tpu_custom_call.1} parent=5 // pred_check
        %p180 = pneg %p179
      $region26: #{tpu_custom_call.1} parent=5 // pred_check_branch
        %182 = sbr.rel (%p180) target = $region28
      $region27: #{tpu_custom_call.1} parent=5 // pred_region
        // Predicated region
        $region29: #{tpu_custom_call.1} parent=27 // pred_check
          %p183 = pneg %p48
        $region30: #{tpu_custom_call.1} parent=27 // pred_check_branch
          %185 = sbr.rel (%p183) target = $region32
        $region31: #{tpu_custom_call.1} parent=27 // pred_region
          %p186 = scmp.lt.s32.totalorder %s21, 1
          %s187 = scalar_select %p186, %s21, 1
          %p188 = scmp.lt.s32.totalorder %s22, 0
          %s189 = scalar_select %p188, %s22, 0
          %s190 = smul.addr %s189, 4
          %s191 = smul.addr %s187, 4
          %s192 = sadd.s32 %s190, %s191
          %s193 = smul.addr %s192, 8
          %s194 = scalar_lea.vmem %s0, %s193
        $region32: #{tpu_custom_call.1} parent=27 // pred_fallthru
          _
      $region28: #{tpu_custom_call.1} parent=5 // pred_fallthru
        _
      %p195 = scmp.le.s32.totalorder 1, %s14
      %p196 = scmp.lt.s32.totalorder %s14, 3
      %p197 = pnand %p195, %p196
      %p198 = pneg %p197
      // Predicated region
      $region33: #{tpu_custom_call.1} parent=5 // pred_check
        _
      $region34: #{tpu_custom_call.1} parent=5 // pred_check_branch
        %200 = sbr.rel (%p197) target = $region36
      $region35: #{tpu_custom_call.1} parent=5 // pred_region
        %s201 = ssub.s32 %s14, 1
        // Predicated region
        $region37: #{tpu_custom_call.1} parent=35 // pred_check
          %p202 = pneg %p96
        $region38: #{tpu_custom_call.1} parent=35 // pred_check_branch
          %204 = sbr.rel (%p202) target = $region40
        $region39: #{tpu_custom_call.1} parent=35 // pred_region
          %205 = dma.done [#allocation5], 12288
        $region40: #{tpu_custom_call.1} parent=35 // pred_fallthru
          _
        %p206 = scmp.lt.s32.totalorder %s23, 1
        %s207 = scalar_select %p206, %s23, 1
        %p208 = scmp.lt.s32.totalorder %s24, 0
        %s209 = scalar_select %p208, %s24, 0
        %s210 = smul.addr %s209, 4
        %s211 = smul.addr %s207, 4
        %s212 = sadd.s32 %s210, %s211
        %s213 = smul.addr %s212, 8
        %s214 = scalar_lea.vmem %s0, %s213
        %p215 = pneg %p54
        %p216 = pneg %p51
        %p217 = pneg %p75
        %p218 = pneg %p72
        %p219 = pneg %p96
        %p220 = pneg %p93
        %p221 = pneg %p117
        %p222 = pneg %p114
        %p223 = pneg %p145
        %p224 = pneg %p142
        %s225 = sand.u32 %s132, 1
        %s226 = scalar_lea.sflag [#allocation6], %s225
        %s227 = sand.u32 %s132, 1
        %s228 = smul.addr %s227, 16
        %s229 = scalar_lea.vmem [#allocation7], %s228
        %p230 = scmp.lt.s32.totalorder %s23, 1
        %s231 = scalar_select %p230, %s23, 1
        %p232 = scmp.lt.s32.totalorder %s24, 0
        %s233 = scalar_select %p232, %s24, 0
        %s234 = smul.addr %s233, 4
        %s235 = smul.addr %s231, 4
        %s236 = sadd.s32 %s234, %s235
        %s237 = smul.addr %s236, 8
        %s238 = scalar_lea.vmem %s0, %s237
        %s239 = smul.u32 2, %s24
        %v240 = vlaneseq
        %v241 = vshrl.u32 %v240, 7
        %v242 = vadd.s32 %v241, 8
        %v243 = vadd.s32 %v241, 16
        %v244 = vadd.s32 %v241, 24
        %s245 = smul.u32 %s24, 16
        %s246 = ssub.s32 %s245, 8
        %v247 = vstv %s246
        %v248 = vadd.s32 %v241, %v247
        %v249 = vadd.s32 %v242, %v247
        %v250 = vadd.s32 %v243, %v247
        %v251 = vadd.s32 %v244, %v247
        %vm252 = vcmp.ge.s32.totalorder %v248, 0
        %vm253 = vcmp.ge.s32.totalorder %v249, 0
        %vm254 = vcmp.ge.s32.totalorder %v250, 0
        %vm255 = vcmp.ge.s32.totalorder %v251, 0
        %vm256 = vcmp.lt.s32.totalorder %v248, 16
        %vm257 = vcmp.lt.s32.totalorder %v249, 16
        %vm258 = vcmp.lt.s32.totalorder %v250, 16
        %vm259 = vcmp.lt.s32.totalorder %v251, 16
        %vm260 = vmand %vm252, %vm256
        %vm261 = vmand %vm253, %vm257
        %vm262 = vmand %vm254, %vm258
        %vm263 = vmand %vm255, %vm259
        %v264 = vld [vmem:[%s238] sm:$0xff]
        %v265 = vld [vmem:[%s238 + $0x8] sm:$0xff]
        %v266 = vld [vmem:[%s238 + $0x10] sm:$0xff]
        %v267 = vld [vmem:[%s238 + $0x18] sm:$0xff]
        %v268 = vrot.slane %v264, 7
        %v269 = vrot.slane %v265, 7
        %v270 = vrot.slane %v266, 7
        %v271 = vrot.slane %v267, 7
        %vm272 = vcmp.lt.s32.totalorder %v241, 1
        %v273 = vsel %vm272, %v270, %v271
        %v274 = vsel %vm272, %v269, %v270
        %v275 = vsel %vm272, %v268, %v269
        %v276 = vsel %vm272, %v271, %v268
        %v277 = vrot.slane %v264, 1
        %v278 = vrot.slane %v265, 1
        %v279 = vrot.slane %v266, 1
        %v280 = vrot.slane %v267, 1
        %vm281 = vcmp.lt.s32.totalorder %v241, 7
        %v282 = vsel %vm281, %v279, %v280
        %v283 = vsel %vm281, %v278, %v279
        %v284 = vsel %vm281, %v277, %v278
        %v285 = vsel %vm281, %v280, %v277
        %v286 = vld [vmem:[%s1] sm:$0xff]
        %s287 = scalar_lea.vmem %s1, 8
        %v288 = vld [vmem:[%s287] sm:$0xff]
        %vm289 = vcmask 64512
        %v291 = vsel %vm289, %v264, 0
        %v294 = vsel %vm289, %v265, 0
        %v297 = vsel %vm289, %v266, 0
        %v300 = vsel %vm289, %v267, 0
        %302 = vmatprep.subr.mxu0 0.0
        %303 = vmatpush1.msra.mxu0 %v288
        %304 = vmatprep.subr.mxu0 0.0
        %305 = vmatpush1.msra.mxu0 0.0
        %306 = vmatprep.subr.mxu0 0.0
        %307 = vmatpush1.msra.mxu0 0.0
        %308 = vmatprep.subr.mxu0 0.0
        %309 = vmatpush1.msra.mxu0 0.0
        %310 = vmatprep.subr.mxu0 0.0
        %311 = vmatpush1.msra.mxu0 0.0
        %312 = vmatprep.subr.mxu0 0.0
        %313 = vmatpush1.msra.mxu0 0.0
        %314 = vmatprep.subr.mxu0 0.0
        %315 = vmatpush1.msra.mxu0 0.0
        %316 = vmatprep.subr.mxu0 0.0
        %317 = vmatpush1.msra.mxu0 0.0
        %318 = vmatprep.subr.mxu0 0.0
        %319 = vmatpush1.msra.mxu0 0.0
        %320 = vmatprep.subr.mxu0 0.0
        %321 = vmatpush1.msra.mxu0 0.0
        %322 = vmatprep.subr.mxu0 0.0
        %323 = vmatpush1.msra.mxu0 0.0
        %324 = vmatprep.subr.mxu0 0.0
        %325 = vmatpush1.msra.mxu0 0.0
        %326 = vmatprep.subr.mxu0 0.0
        %327 = vmatpush1.msra.mxu0 0.0
        %328 = vmatprep.subr.mxu0 0.0
        %329 = vmatpush1.msra.mxu0 0.0
        %330 = vmatprep.subr.mxu0 0.0
        %331 = vmatpush1.msra.mxu0 0.0
        %332 = vmatprep.subr.mxu0 0.0
        %333 = vmatpush1.msra.mxu0 0.0
        %334 = vmatprep.subr.mxu0 0.0
        %335 = vmatpush1.msra.mxu0 0.0
        %336 = vmatprep.subr.mxu0 0.0
        %337 = vmatpush1.msra.mxu0 0.0
        %338 = vmatprep.subr.mxu0 0.0
        %339 = vmatpush1.msra.mxu0 0.0
        %340 = vmatprep.subr.mxu0 0.0
        %341 = vmatpush1.msra.mxu0 0.0
        %342 = vmatprep.subr.mxu0 0.0
        %343 = vmatpush1.msra.mxu0 0.0
        %344 = vmatprep.subr.mxu0 0.0
        %345 = vmatpush1.msra.mxu0 0.0
        %346 = vmatprep.subr.mxu0 0.0
        %347 = vmatpush1.msra.mxu0 0.0
        %348 = vmatprep.subr.mxu0 0.0
        %349 = vmatpush1.msra.mxu0 0.0
        %350 = vmatprep.subr.mxu0 0.0
        %351 = vmatpush1.msra.mxu0 0.0
        %352 = vmatprep.subr.mxu0 0.0
        %353 = vmatpush1.msra.mxu0 0.0
        %354 = vmatprep.subr.mxu0 0.0
        %355 = vmatpush1.msra.mxu0 0.0
        %356 = vmatprep.subr.mxu0 0.0
        %357 = vmatpush1.msra.mxu0 0.0
        %358 = vmatprep.subr.mxu0 0.0
        %359 = vmatpush1.msra.mxu0 0.0
        %360 = vmatprep.subr.mxu0 0.0
        %361 = vmatpush1.msra.mxu0 0.0
        %362 = vmatprep.subr.mxu0 0.0
        %363 = vmatpush1.msra.mxu0 0.0
        %364 = vmatprep.subr.mxu0 0.0
        %365 = vmatpush1.msra.mxu0 0.0
        %366 = vmatprep.mubr.f32.mxu0 0.0
        %367 = vmatmul.mubr.f32.gmra.mrb[0].mxu0 %v291
        %v368 = vpop.f32.mrb[0].mxu0
        %v369 = vadd.f32 0.0, %v368
        %v370 = vpop.f32.mrb[0].mxu0
        %371 = vmatprep.mubr.f32.mxu0 0.0
        %372 = vmatmul.mubr.f32.gmra.mrb[0].mxu0 %v294
        %v373 = vpop.f32.mrb[0].mxu0
        %v374 = vadd.f32 0.0, %v373
        %v375 = vpop.f32.mrb[0].mxu0
        %376 = vmatprep.mubr.f32.mxu0 0.0
        %377 = vmatmul.mubr.f32.gmra.mrb[0].mxu0 %v297
        %v378 = vpop.f32.mrb[0].mxu0
        %v379 = vadd.f32 0.0, %v378
        %v380 = vpop.f32.mrb[0].mxu0
        %381 = vmatprep.mubr.f32.mxu0 0.0
        %382 = vmatmul.mubr.f32.gmra.mrb[0].mxu0 %v300
        %v383 = vpop.f32.mrb[0].mxu0
        %v384 = vadd.f32 0.0, %v383
        %v385 = vpop.f32.mrb[0].mxu0
        %386 = vdwg.mxu0
        %v388 = vsel %vm289, %v276, 0
        %v391 = vsel %vm289, %v275, 0
        %v394 = vsel %vm289, %v274, 0
        %v397 = vsel %vm289, %v273, 0
        %399 = vmatprep.subr.mxu0 0.0
        %400 = vmatpush1.msra.mxu0 %v286
        %401 = vmatprep.subr.mxu0 0.0
        %402 = vmatpush1.msra.mxu0 0.0
        %403 = vmatprep.subr.mxu0 0.0
        %404 = vmatpush1.msra.mxu0 0.0
        %405 = vmatprep.subr.mxu0 0.0
        %406 = vmatpush1.msra.mxu0 0.0
        %407 = vmatprep.subr.mxu0 0.0
        %408 = vmatpush1.msra.mxu0 0.0
        %409 = vmatprep.subr.mxu0 0.0
        %410 = vmatpush1.msra.mxu0 0.0
        %411 = vmatprep.subr.mxu0 0.0
        %412 = vmatpush1.msra.mxu0 0.0
        %413 = vmatprep.subr.mxu0 0.0
        %414 = vmatpush1.msra.mxu0 0.0
        %415 = vmatprep.subr.mxu0 0.0
        %416 = vmatpush1.msra.mxu0 0.0
        %417 = vmatprep.subr.mxu0 0.0
        %418 = vmatpush1.msra.mxu0 0.0
        %419 = vmatprep.subr.mxu0 0.0
        %420 = vmatpush1.msra.mxu0 0.0
        %421 = vmatprep.subr.mxu0 0.0
        %422 = vmatpush1.msra.mxu0 0.0
        %423 = vmatprep.subr.mxu0 0.0
        %424 = vmatpush1.msra.mxu0 0.0
        %425 = vmatprep.subr.mxu0 0.0
        %426 = vmatpush1.msra.mxu0 0.0
        %427 = vmatprep.subr.mxu0 0.0
        %428 = vmatpush1.msra.mxu0 0.0
        %429 = vmatprep.subr.mxu0 0.0
        %430 = vmatpush1.msra.mxu0 0.0
        %431 = vmatprep.subr.mxu0 0.0
        %432 = vmatpush1.msra.mxu0 0.0
        %433 = vmatprep.subr.mxu0 0.0
        %434 = vmatpush1.msra.mxu0 0.0
        %435 = vmatprep.subr.mxu0 0.0
        %436 = vmatpush1.msra.mxu0 0.0
        %437 = vmatprep.subr.mxu0 0.0
        %438 = vmatpush1.msra.mxu0 0.0
        %439 = vmatprep.subr.mxu0 0.0
        %440 = vmatpush1.msra.mxu0 0.0
        %441 = vmatprep.subr.mxu0 0.0
        %442 = vmatpush1.msra.mxu0 0.0
        %443 = vmatprep.subr.mxu0 0.0
        %444 = vmatpush1.msra.mxu0 0.0
        %445 = vmatprep.subr.mxu0 0.0
        %446 = vmatpush1.msra.mxu0 0.0
        %447 = vmatprep.subr.mxu0 0.0
        %448 = vmatpush1.msra.mxu0 0.0
        %449 = vmatprep.subr.mxu0 0.0
        %450 = vmatpush1.msra.mxu0 0.0
        %451 = vmatprep.subr.mxu0 0.0
        %452 = vmatpush1.msra.mxu0 0.0
        %453 = vmatprep.subr.mxu0 0.0
        %454 = vmatpush1.msra.mxu0 0.0
        %455 = vmatprep.subr.mxu0 0.0
        %456 = vmatpush1.msra.mxu0 0.0
        %457 = vmatprep.subr.mxu0 0.0
        %458 = vmatpush1.msra.mxu0 0.0
        %459 = vmatprep.subr.mxu0 0.0
        %460 = vmatpush1.msra.mxu0 0.0
        %461 = vmatprep.subr.mxu0 0.0
        %462 = vmatpush1.msra.mxu0 0.0
        %463 = vmatprep.mubr.f32.mxu0 0.0
        %464 = vmatmul.mubr.f32.gmra.mrb[0].mxu0 %v388
        %v465 = vpop.f32.mrb[0].mxu0
        %v466 = vadd.f32 %v369, %v465
        %v467 = vpop.f32.mrb[0].mxu0
        %468 = vmatprep.mubr.f32.mxu0 0.0
        %469 = vmatmul.mubr.f32.gmra.mrb[0].mxu0 %v391
        %v470 = vpop.f32.mrb[0].mxu0
        %v471 = vadd.f32 %v374, %v470
        %v472 = vpop.f32.mrb[0].mxu0
        %473 = vmatprep.mubr.f32.mxu0 0.0
        %474 = vmatmul.mubr.f32.gmra.mrb[0].mxu0 %v394
        %v475 = vpop.f32.mrb[0].mxu0
        %v476 = vadd.f32 %v379, %v475
        %v477 = vpop.f32.mrb[0].mxu0
        %478 = vmatprep.mubr.f32.mxu0 0.0
        %479 = vmatmul.mubr.f32.gmra.mrb[0].mxu0 %v397
        %v480 = vpop.f32.mrb[0].mxu0
        %v481 = vadd.f32 %v384, %v480
        %v482 = vpop.f32.mrb[0].mxu0
        %483 = vdwg.mxu0
        %s484 = scalar_lea.vmem %s1, 16
        %v485 = vld [vmem:[%s484] sm:$0xff]
        %v487 = vsel %vm289, %v284, 0
        %v490 = vsel %vm289, %v283, 0
        %v493 = vsel %vm289, %v282, 0
        %v496 = vsel %vm289, %v285, 0
        %498 = vmatprep.subr.mxu0 0.0
        %499 = vmatpush1.msra.mxu0 %v485
        %500 = vmatprep.subr.mxu0 0.0
        %501 = vmatpush1.msra.mxu0 0.0
        %502 = vmatprep.subr.mxu0 0.0
        %503 = vmatpush1.msra.mxu0 0.0
        %504 = vmatprep.subr.mxu0 0.0
        %505 = vmatpush1.msra.mxu0 0.0
        %506 = vmatprep.subr.mxu0 0.0
        %507 = vmatpush1.msra.mxu0 0.0
        %508 = vmatprep.subr.mxu0 0.0
        %509 = vmatpush1.msra.mxu0 0.0
        %510 = vmatprep.subr.mxu0 0.0
        %511 = vmatpush1.msra.mxu0 0.0
        %512 = vmatprep.subr.mxu0 0.0
        %513 = vmatpush1.msra.mxu0 0.0
        %514 = vmatprep.subr.mxu0 0.0
        %515 = vmatpush1.msra.mxu0 0.0
        %516 = vmatprep.subr.mxu0 0.0
        %517 = vmatpush1.msra.mxu0 0.0
        %518 = vmatprep.subr.mxu0 0.0
        %519 = vmatpush1.msra.mxu0 0.0
        %520 = vmatprep.subr.mxu0 0.0
        %521 = vmatpush1.msra.mxu0 0.0
        %522 = vmatprep.subr.mxu0 0.0
        %523 = vmatpush1.msra.mxu0 0.0
        %524 = vmatprep.subr.mxu0 0.0
        %525 = vmatpush1.msra.mxu0 0.0
        %526 = vmatprep.subr.mxu0 0.0
        %527 = vmatpush1.msra.mxu0 0.0
        %528 = vmatprep.subr.mxu0 0.0
        %529 = vmatpush1.msra.mxu0 0.0
        %530 = vmatprep.subr.mxu0 0.0
        %531 = vmatpush1.msra.mxu0 0.0
        %532 = vmatprep.subr.mxu0 0.0
        %533 = vmatpush1.msra.mxu0 0.0
        %534 = vmatprep.subr.mxu0 0.0
        %535 = vmatpush1.msra.mxu0 0.0
        %536 = vmatprep.subr.mxu0 0.0
        %537 = vmatpush1.msra.mxu0 0.0
        %538 = vmatprep.subr.mxu0 0.0
        %539 = vmatpush1.msra.mxu0 0.0
        %540 = vmatprep.subr.mxu0 0.0
        %541 = vmatpush1.msra.mxu0 0.0
        %542 = vmatprep.subr.mxu0 0.0
        %543 = vmatpush1.msra.mxu0 0.0
        %544 = vmatprep.subr.mxu0 0.0
        %545 = vmatpush1.msra.mxu0 0.0
        %546 = vmatprep.subr.mxu0 0.0
        %547 = vmatpush1.msra.mxu0 0.0
        %548 = vmatprep.subr.mxu0 0.0
        %549 = vmatpush1.msra.mxu0 0.0
        %550 = vmatprep.subr.mxu0 0.0
        %551 = vmatpush1.msra.mxu0 0.0
        %552 = vmatprep.subr.mxu0 0.0
        %553 = vmatpush1.msra.mxu0 0.0
        %554 = vmatprep.subr.mxu0 0.0
        %555 = vmatpush1.msra.mxu0 0.0
        %556 = vmatprep.subr.mxu0 0.0
        %557 = vmatpush1.msra.mxu0 0.0
        %558 = vmatprep.subr.mxu0 0.0
        %559 = vmatpush1.msra.mxu0 0.0
        %560 = vmatprep.subr.mxu0 0.0
        %561 = vmatpush1.msra.mxu0 0.0
        %562 = vmatprep.mubr.f32.mxu0 0.0
        %563 = vmatmul.mubr.f32.gmra.mrb[0].mxu0 %v487
        %v564 = vpop.f32.mrb[0].mxu0
        %v565 = vadd.f32 0.0, %v564
        %v566 = vpop.f32.mrb[0].mxu0
        %567 = vmatprep.mubr.f32.mxu0 0.0
        %568 = vmatmul.mubr.f32.gmra.mrb[0].mxu0 %v490
        %v569 = vpop.f32.mrb[0].mxu0
        %v570 = vadd.f32 0.0, %v569
        %v571 = vpop.f32.mrb[0].mxu0
        %572 = vmatprep.mubr.f32.mxu0 0.0
        %573 = vmatmul.mubr.f32.gmra.mrb[0].mxu0 %v493
        %v574 = vpop.f32.mrb[0].mxu0
        %v575 = vadd.f32 0.0, %v574
        %v576 = vpop.f32.mrb[0].mxu0
        %577 = vmatprep.mubr.f32.mxu0 0.0
        %578 = vmatmul.mubr.f32.gmra.mrb[0].mxu0 %v496
        %v579 = vpop.f32.mrb[0].mxu0
        %v580 = vadd.f32 0.0, %v579
        %v581 = vpop.f32.mrb[0].mxu0
        %582 = vdwg.mxu0
        %v583 = vadd.f32 %v466, %v565
        %v584 = vadd.f32 %v471, %v570
        %v585 = vadd.f32 %v476, %v575
        %v586 = vadd.f32 %v481, %v580
        %v587 = vld [vmem:[%s3] sm:$0x1]
        %v589 = vlaneseq
        %v590 = vshrl.u32 %v589, 7
        %v591 = vsub.s32 0, %v590
        %v592 = vrot.slane %v587, %v591
        %v594 = vadd.f32 %v583, %v592
        %v595 = vadd.f32 %v584, %v592
        %v596 = vadd.f32 %v585, %v592
        %v597 = vadd.f32 %v586, %v592
        %v598 = vmax.f32 %v594, 0.0
        %v599 = vmax.f32 %v595, 0.0
        %v600 = vmax.f32 %v596, 0.0
        %v601 = vmax.f32 %v597, 0.0
        %v602 = vsel %vm260, 1, 0
        %v603 = vsel %vm261, 1, 0
        %v604 = vsel %vm262, 1, 0
        %v605 = vsel %vm263, 1, 0
        %vm606 = vcmp.eq.s32.totalorder %v602, 1
        %vm607 = vcmp.eq.s32.totalorder %v603, 1
        %vm608 = vcmp.eq.s32.totalorder %v604, 1
        %vm609 = vcmp.eq.s32.totalorder %v605, 1
        %v610 = vsel %vm606, %v598, 0.0
        %v611 = vsel %vm607, %v599, 0.0
        %v612 = vsel %vm608, %v600, 0.0
        %v613 = vsel %vm609, %v601, 0.0
        %614 = vst [vmem:[#allocation2] sm:$0xff] %v610
        %615 = vst [vmem:[#allocation2 + $0x8] sm:$0xff] %v611
        %616 = vst [vmem:[#allocation2 + $0x10] sm:$0xff] %v612
        %617 = vst [vmem:[#allocation2 + $0x18] sm:$0xff] %v613
        %v618 = vld [vmem:[#allocation2] sm:$0xff]
        %v619 = vld [vmem:[#allocation2 + $0x8] sm:$0xff]
        %v620 = vld [vmem:[#allocation2 + $0x10] sm:$0xff]
        %v621 = vld [vmem:[#allocation2 + $0x18] sm:$0xff]
        %v622 = vrot.slane %v618, 6
        %v623 = vrot.slane %v619, 6
        %v624 = vrot.slane %v620, 6
        %v625 = vrot.slane %v621, 6
        %vm626 = vcmp.lt.s32.totalorder %v241, 2
        %v627 = vsel %vm626, %v624, %v625
        %v628 = vsel %vm626, %v623, %v624
        %v629 = vsel %vm626, %v622, %v623
        %v630 = vsel %vm626, %v625, %v622
        %v631 = vrot.slane %v618, 2
        %v632 = vrot.slane %v619, 2
        %v633 = vrot.slane %v620, 2
        %v634 = vrot.slane %v621, 2
        %vm635 = vcmp.lt.s32.totalorder %v241, 6
        %v636 = vsel %vm635, %v633, %v634
        %v637 = vsel %vm635, %v632, %v633
        %v638 = vsel %vm635, %v631, %v632
        %v639 = vsel %vm635, %v634, %v631
        %v640 = vld [vmem:[#allocation4] sm:$0xff]
        %v641 = vld [vmem:[#allocation4 + $0x8] sm:$0xff]
        %v642 = vld [vmem:[#allocation4 + $0x10] sm:$0xff]
        %v643 = vld [vmem:[#allocation4 + $0x18] sm:$0xff]
        %v644 = vld [vmem:[#allocation4 + $0x20] sm:$0xff]
        %v645 = vld [vmem:[#allocation4 + $0x28] sm:$0xff]
        %v646 = vld [vmem:[#allocation4 + $0x30] sm:$0xff]
        %v647 = vld [vmem:[#allocation4 + $0x38] sm:$0xff]
        %v648 = vld [vmem:[#allocation4 + $0x40] sm:$0xff]
        %v649 = vld [vmem:[#allocation4 + $0x48] sm:$0xff]
        %v650 = vld [vmem:[#allocation4 + $0x50] sm:$0xff]
        %v651 = vld [vmem:[#allocation4 + $0x58] sm:$0xff]
        %v652 = vld [vmem:[#allocation4 + $0x60] sm:$0xff]
        %v653 = vld [vmem:[#allocation4 + $0x68] sm:$0xff]
        %v654 = vld [vmem:[#allocation4 + $0x70] sm:$0xff]
        %v655 = vld [vmem:[#allocation4 + $0x78] sm:$0xff]
        %v656 = vld [vmem:[#allocation4 + $0x80] sm:$0xff]
        %v657 = vld [vmem:[#allocation4 + $0x88] sm:$0xff]
        %v658 = vld [vmem:[#allocation4 + $0x90] sm:$0xff]
        %v659 = vld [vmem:[#allocation4 + $0x98] sm:$0xff]
        %v660 = vld [vmem:[#allocation4 + $0xa0] sm:$0xff]
        %v661 = vld [vmem:[#allocation4 + $0xa8] sm:$0xff]
        %v662 = vld [vmem:[#allocation4 + $0xb0] sm:$0xff]
        %v663 = vld [vmem:[#allocation4 + $0xb8] sm:$0xff]
        %v664 = vld [vmem:[#allocation4 + $0xc0] sm:$0xff]
        %v665 = vld [vmem:[#allocation4 + $0xc8] sm:$0xff]
        %v666 = vld [vmem:[#allocation4 + $0xd0] sm:$0xff]
        %v667 = vld [vmem:[#allocation4 + $0xd8] sm:$0xff]
        %v668 = vld [vmem:[#allocation4 + $0xe0] sm:$0xff]
        %v669 = vld [vmem:[#allocation4 + $0xe8] sm:$0xff]
        %v670 = vld [vmem:[#allocation4 + $0xf0] sm:$0xff]
        %v671 = vld [vmem:[#allocation4 + $0xf8] sm:$0xff]
        %v672 = vld [vmem:[#allocation4 + $0x100] sm:$0xff]
        %v673 = vld [vmem:[#allocation4 + $0x108] sm:$0xff]
        %v674 = vld [vmem:[#allocation4 + $0x110] sm:$0xff]
        %v675 = vld [vmem:[#allocation4 + $0x118] sm:$0xff]
        %v676 = vld [vmem:[#allocation4 + $0x120] sm:$0xff]
        %v677 = vld [vmem:[#allocation4 + $0x128] sm:$0xff]
        %v678 = vld [vmem:[#allocation4 + $0x130] sm:$0xff]
        %v679 = vld [vmem:[#allocation4 + $0x138] sm:$0xff]
        %v680 = vld [vmem:[#allocation4 + $0x140] sm:$0xff]
        %v681 = vld [vmem:[#allocation4 + $0x148] sm:$0xff]
        %v682 = vld [vmem:[#allocation4 + $0x150] sm:$0xff]
        %v683 = vld [vmem:[#allocation4 + $0x158] sm:$0xff]
        %v684 = vld [vmem:[#allocation4 + $0x160] sm:$0xff]
        %v685 = vld [vmem:[#allocation4 + $0x168] sm:$0xff]
        %v686 = vld [vmem:[#allocation4 + $0x170] sm:$0xff]
        %v687 = vld [vmem:[#allocation4 + $0x178] sm:$0xff]
        %s688 = scalar_lea.vmem %s3, 1
        %v689 = vld [vmem:[%s688] sm:$0x1]
        %v691 = vlaneseq
        %v692 = vshrl.u32 %v691, 7
        %v693 = vsub.s32 0, %v692
        %v694 = vrot.slane %v689, %v693
        %696 = vmatprep.subr.mxu0 0.0
        %697 = vmatpush1.msra.mxu0 %v640
        %698 = vmatprep.subr.mxu0 0.0
        %699 = vmatpush1.msra.mxu0 %v641
        %700 = vmatprep.subr.mxu0 0.0
        %701 = vmatpush1.msra.mxu0 %v642
        %702 = vmatprep.subr.mxu0 0.0
        %703 = vmatpush1.msra.mxu0 %v643
        %704 = vmatprep.subr.mxu0 0.0
        %705 = vmatpush1.msra.mxu0 %v644
        %706 = vmatprep.subr.mxu0 0.0
        %707 = vmatpush1.msra.mxu0 %v645
        %708 = vmatprep.subr.mxu0 0.0
        %709 = vmatpush1.msra.mxu0 %v646
        %710 = vmatprep.subr.mxu0 0.0
        %711 = vmatpush1.msra.mxu0 %v647
        %712 = vmatprep.subr.mxu0 0.0
        %713 = vmatpush1.msra.mxu0 %v648
        %714 = vmatprep.subr.mxu0 0.0
        %715 = vmatpush1.msra.mxu0 %v649
        %716 = vmatprep.subr.mxu0 0.0
        %717 = vmatpush1.msra.mxu0 %v650
        %718 = vmatprep.subr.mxu0 0.0
        %719 = vmatpush1.msra.mxu0 %v651
        %720 = vmatprep.subr.mxu0 0.0
        %721 = vmatpush1.msra.mxu0 %v652
        %722 = vmatprep.subr.mxu0 0.0
        %723 = vmatpush1.msra.mxu0 %v653
        %724 = vmatprep.subr.mxu0 0.0
        %725 = vmatpush1.msra.mxu0 %v654
        %726 = vmatprep.subr.mxu0 0.0
        %727 = vmatpush1.msra.mxu0 %v655
        %728 = vmatprep.subr.mxu0 0.0
        %729 = vmatpush1.msra.mxu0 %v656
        %730 = vmatprep.subr.mxu0 0.0
        %731 = vmatpush1.msra.mxu0 %v657
        %732 = vmatprep.subr.mxu0 0.0
        %733 = vmatpush1.msra.mxu0 %v658
        %734 = vmatprep.subr.mxu0 0.0
        %735 = vmatpush1.msra.mxu0 %v659
        %736 = vmatprep.subr.mxu0 0.0
        %737 = vmatpush1.msra.mxu0 %v660
        %738 = vmatprep.subr.mxu0 0.0
        %739 = vmatpush1.msra.mxu0 %v661
        %740 = vmatprep.subr.mxu0 0.0
        %741 = vmatpush1.msra.mxu0 %v662
        %742 = vmatprep.subr.mxu0 0.0
        %743 = vmatpush1.msra.mxu0 %v663
        %744 = vmatprep.subr.mxu0 0.0
        %745 = vmatpush1.msra.mxu0 %v664
        %746 = vmatprep.subr.mxu0 0.0
        %747 = vmatpush1.msra.mxu0 %v665
        %748 = vmatprep.subr.mxu0 0.0
        %749 = vmatpush1.msra.mxu0 %v666
        %750 = vmatprep.subr.mxu0 0.0
        %751 = vmatpush1.msra.mxu0 %v667
        %752 = vmatprep.subr.mxu0 0.0
        %753 = vmatpush1.msra.mxu0 %v668
        %754 = vmatprep.subr.mxu0 0.0
        %755 = vmatpush1.msra.mxu0 %v669
        %756 = vmatprep.subr.mxu0 0.0
        %757 = vmatpush1.msra.mxu0 %v670
        %758 = vmatprep.subr.mxu0 0.0
        %759 = vmatpush1.msra.mxu0 %v671
        %760 = vmatprep.mubr.f32.mxu0 %v618
        %761 = vmatmul.mubr.f32.gmra.mrb[0].mxu0 %v630
        %v762 = vpop.f32.mrb[0].mxu0
        %v763 = vadd.f32 %v694, %v762
        %v764 = vpop.f32.mrb[0].mxu0
        %765 = vmatprep.mubr.f32.mxu0 %v619
        %766 = vmatmul.mubr.f32.gmra.mrb[0].mxu0 %v629
        %v767 = vpop.f32.mrb[0].mxu0
        %v768 = vadd.f32 %v694, %v767
        %v769 = vpop.f32.mrb[0].mxu0
        %770 = vmatprep.mubr.f32.mxu0 %v620
        %771 = vmatmul.mubr.f32.gmra.mrb[0].mxu0 %v628
        %v772 = vpop.f32.mrb[0].mxu0
        %v773 = vadd.f32 %v694, %v772
        %v774 = vpop.f32.mrb[0].mxu0
        %775 = vmatprep.mubr.f32.mxu0 %v621
        %776 = vmatmul.mubr.f32.gmra.mrb[0].mxu0 %v627
        %v777 = vpop.f32.mrb[0].mxu0
        %v778 = vadd.f32 %v694, %v777
        %v779 = vpop.f32.mrb[0].mxu0
        %780 = vdwg.mxu0
        %781 = vmatprep.subr.mxu0 0.0
        %782 = vmatpush1.msra.mxu0 %v672
        %783 = vmatprep.subr.mxu0 0.0
        %784 = vmatpush1.msra.mxu0 %v673
        %785 = vmatprep.subr.mxu0 0.0
        %786 = vmatpush1.msra.mxu0 %v674
        %787 = vmatprep.subr.mxu0 0.0
        %788 = vmatpush1.msra.mxu0 %v675
        %789 = vmatprep.subr.mxu0 0.0
        %790 = vmatpush1.msra.mxu0 %v676
        %791 = vmatprep.subr.mxu0 0.0
        %792 = vmatpush1.msra.mxu0 %v677
        %793 = vmatprep.subr.mxu0 0.0
        %794 = vmatpush1.msra.mxu0 %v678
        %795 = vmatprep.subr.mxu0 0.0
        %796 = vmatpush1.msra.mxu0 %v679
        %797 = vmatprep.subr.mxu0 0.0
        %798 = vmatpush1.msra.mxu0 %v680
        %799 = vmatprep.subr.mxu0 0.0
        %800 = vmatpush1.msra.mxu0 %v681
        %801 = vmatprep.subr.mxu0 0.0
        %802 = vmatpush1.msra.mxu0 %v682
        %803 = vmatprep.subr.mxu0 0.0
        %804 = vmatpush1.msra.mxu0 %v683
        %805 = vmatprep.subr.mxu0 0.0
        %806 = vmatpush1.msra.mxu0 %v684
        %807 = vmatprep.subr.mxu0 0.0
        %808 = vmatpush1.msra.mxu0 %v685
        %809 = vmatprep.subr.mxu0 0.0
        %810 = vmatpush1.msra.mxu0 %v686
        %811 = vmatprep.subr.mxu0 0.0
        %812 = vmatpush1.msra.mxu0 %v687
        %813 = vmatprep.subr.mxu0 0.0
        %814 = vmatpush1.msra.mxu0 0.0
        %815 = vmatprep.subr.mxu0 0.0
        %816 = vmatpush1.msra.mxu0 0.0
        %817 = vmatprep.subr.mxu0 0.0
        %818 = vmatpush1.msra.mxu0 0.0
        %819 = vmatprep.subr.mxu0 0.0
        %820 = vmatpush1.msra.mxu0 0.0
        %821 = vmatprep.subr.mxu0 0.0
        %822 = vmatpush1.msra.mxu0 0.0
        %823 = vmatprep.subr.mxu0 0.0
        %824 = vmatpush1.msra.mxu0 0.0
        %825 = vmatprep.subr.mxu0 0.0
        %826 = vmatpush1.msra.mxu0 0.0
        %827 = vmatprep.subr.mxu0 0.0
        %828 = vmatpush1.msra.mxu0 0.0
        %829 = vmatprep.subr.mxu0 0.0
        %830 = vmatpush1.msra.mxu0 0.0
        %831 = vmatprep.subr.mxu0 0.0
        %832 = vmatpush1.msra.mxu0 0.0
        %833 = vmatprep.subr.mxu0 0.0
        %834 = vmatpush1.msra.mxu0 0.0
        %835 = vmatprep.subr.mxu0 0.0
        %836 = vmatpush1.msra.mxu0 0.0
        %837 = vmatprep.subr.mxu0 0.0
        %838 = vmatpush1.msra.mxu0 0.0
        %839 = vmatprep.subr.mxu0 0.0
        %840 = vmatpush1.msra.mxu0 0.0
        %841 = vmatprep.subr.mxu0 0.0
        %842 = vmatpush1.msra.mxu0 0.0
        %843 = vmatprep.subr.mxu0 0.0
        %844 = vmatpush1.msra.mxu0 0.0
        %845 = vmatprep.mubr.f32.mxu0 0.0
        %846 = vmatmul.mubr.f32.gmra.mrb[0].mxu0 %v638
        %v847 = vpop.f32.mrb[0].mxu0
        %v848 = vadd.f32 %v763, %v847
        %v849 = vpop.f32.mrb[0].mxu0
        %850 = vmatprep.mubr.f32.mxu0 0.0
        %851 = vmatmul.mubr.f32.gmra.mrb[0].mxu0 %v637
        %v852 = vpop.f32.mrb[0].mxu0
        %v853 = vadd.f32 %v768, %v852
        %v854 = vpop.f32.mrb[0].mxu0
        %855 = vmatprep.mubr.f32.mxu0 0.0
        %856 = vmatmul.mubr.f32.gmra.mrb[0].mxu0 %v636
        %v857 = vpop.f32.mrb[0].mxu0
        %v858 = vadd.f32 %v773, %v857
        %v859 = vpop.f32.mrb[0].mxu0
        %860 = vmatprep.mubr.f32.mxu0 0.0
        %861 = vmatmul.mubr.f32.gmra.mrb[0].mxu0 %v639
        %v862 = vpop.f32.mrb[0].mxu0
        %v863 = vadd.f32 %v778, %v862
        %v864 = vpop.f32.mrb[0].mxu0
        %865 = vdwg.mxu0
        %v866 = vmax.f32 %v848, 0.0
        %v867 = vmax.f32 %v853, 0.0
        %v868 = vmax.f32 %v858, 0.0
        %v869 = vmax.f32 %v863, 0.0
        %v870 = vsel %vm606, %v866, 0.0
        %v871 = vsel %vm607, %v867, 0.0
        %v872 = vsel %vm608, %v868, 0.0
        %v873 = vsel %vm609, %v869, 0.0
        %874 = vst [vmem:[#allocation3] sm:$0xff] %v870
        %875 = vst [vmem:[#allocation3 + $0x8] sm:$0xff] %v871
        %876 = vst [vmem:[#allocation3 + $0x10] sm:$0xff] %v872
        %877 = vst [vmem:[#allocation3 + $0x18] sm:$0xff] %v873
        %v878 = vld [vmem:[#allocation3] sm:$0xff]
        %v879 = vld [vmem:[#allocation3 + $0x8] sm:$0xff]
        %v880 = vld [vmem:[#allocation3 + $0x10] sm:$0xff]
        %v881 = vld [vmem:[#allocation3 + $0x18] sm:$0xff]
        %v882 = vrot.slane %v878, 4
        %v883 = vrot.slane %v879, 4
        %v884 = vrot.slane %v880, 4
        %v885 = vrot.slane %v881, 4
        %vm886 = vcmp.lt.s32.totalorder %v241, 4
        %v887 = vsel %vm886, %v884, %v885
        %v888 = vsel %vm886, %v883, %v884
        %v889 = vsel %vm886, %v882, %v883
        %v890 = vsel %vm886, %v885, %v882
        %s891 = scalar_lea.vmem [#allocation4], 384
        %v892 = vld [vmem:[%s891] sm:$0xff]
        %v893 = vld [vmem:[%s891 + $0x8] sm:$0xff]
        %v894 = vld [vmem:[%s891 + $0x10] sm:$0xff]
        %v895 = vld [vmem:[%s891 + $0x18] sm:$0xff]
        %v896 = vld [vmem:[%s891 + $0x20] sm:$0xff]
        %v897 = vld [vmem:[%s891 + $0x28] sm:$0xff]
        %v898 = vld [vmem:[%s891 + $0x30] sm:$0xff]
        %v899 = vld [vmem:[%s891 + $0x38] sm:$0xff]
        %v900 = vld [vmem:[%s891 + $0x40] sm:$0xff]
        %v901 = vld [vmem:[%s891 + $0x48] sm:$0xff]
        %v902 = vld [vmem:[%s891 + $0x50] sm:$0xff]
        %v903 = vld [vmem:[%s891 + $0x58] sm:$0xff]
        %v904 = vld [vmem:[%s891 + $0x60] sm:$0xff]
        %v905 = vld [vmem:[%s891 + $0x68] sm:$0xff]
        %v906 = vld [vmem:[%s891 + $0x70] sm:$0xff]
        %v907 = vld [vmem:[%s891 + $0x78] sm:$0xff]
        %v908 = vld [vmem:[%s891 + $0x80] sm:$0xff]
        %v909 = vld [vmem:[%s891 + $0x88] sm:$0xff]
        %v910 = vld [vmem:[%s891 + $0x90] sm:$0xff]
        %v911 = vld [vmem:[%s891 + $0x98] sm:$0xff]
        %v912 = vld [vmem:[%s891 + $0xa0] sm:$0xff]
        %v913 = vld [vmem:[%s891 + $0xa8] sm:$0xff]
        %v914 = vld [vmem:[%s891 + $0xb0] sm:$0xff]
        %v915 = vld [vmem:[%s891 + $0xb8] sm:$0xff]
        %v916 = vld [vmem:[%s891 + $0xc0] sm:$0xff]
        %v917 = vld [vmem:[%s891 + $0xc8] sm:$0xff]
        %v918 = vld [vmem:[%s891 + $0xd0] sm:$0xff]
        %v919 = vld [vmem:[%s891 + $0xd8] sm:$0xff]
        %v920 = vld [vmem:[%s891 + $0xe0] sm:$0xff]
        %v921 = vld [vmem:[%s891 + $0xe8] sm:$0xff]
        %v922 = vld [vmem:[%s891 + $0xf0] sm:$0xff]
        %v923 = vld [vmem:[%s891 + $0xf8] sm:$0xff]
        %v924 = vld [vmem:[%s891 + $0x100] sm:$0xff]
        %v925 = vld [vmem:[%s891 + $0x108] sm:$0xff]
        %v926 = vld [vmem:[%s891 + $0x110] sm:$0xff]
        %v927 = vld [vmem:[%s891 + $0x118] sm:$0xff]
        %v928 = vld [vmem:[%s891 + $0x120] sm:$0xff]
        %v929 = vld [vmem:[%s891 + $0x128] sm:$0xff]
        %v930 = vld [vmem:[%s891 + $0x130] sm:$0xff]
        %v931 = vld [vmem:[%s891 + $0x138] sm:$0xff]
        %v932 = vld [vmem:[%s891 + $0x140] sm:$0xff]
        %v933 = vld [vmem:[%s891 + $0x148] sm:$0xff]
        %v934 = vld [vmem:[%s891 + $0x150] sm:$0xff]
        %v935 = vld [vmem:[%s891 + $0x158] sm:$0xff]
        %v936 = vld [vmem:[%s891 + $0x160] sm:$0xff]
        %v937 = vld [vmem:[%s891 + $0x168] sm:$0xff]
        %v938 = vld [vmem:[%s891 + $0x170] sm:$0xff]
        %v939 = vld [vmem:[%s891 + $0x178] sm:$0xff]
        %s940 = scalar_lea.vmem %s3, 2
        %v941 = vld [vmem:[%s940] sm:$0x1]
        %v943 = vlaneseq
        %v944 = vshrl.u32 %v943, 7
        %v945 = vsub.s32 0, %v944
        %v946 = vrot.slane %v941, %v945
        %948 = vmatprep.subr.mxu0 0.0
        %949 = vmatpush1.msra.mxu0 %v892
        %950 = vmatprep.subr.mxu0 0.0
        %951 = vmatpush1.msra.mxu0 %v893
        %952 = vmatprep.subr.mxu0 0.0
        %953 = vmatpush1.msra.mxu0 %v894
        %954 = vmatprep.subr.mxu0 0.0
        %955 = vmatpush1.msra.mxu0 %v895
        %956 = vmatprep.subr.mxu0 0.0
        %957 = vmatpush1.msra.mxu0 %v896
        %958 = vmatprep.subr.mxu0 0.0
        %959 = vmatpush1.msra.mxu0 %v897
        %960 = vmatprep.subr.mxu0 0.0
        %961 = vmatpush1.msra.mxu0 %v898
        %962 = vmatprep.subr.mxu0 0.0
        %963 = vmatpush1.msra.mxu0 %v899
        %964 = vmatprep.subr.mxu0 0.0
        %965 = vmatpush1.msra.mxu0 %v900
        %966 = vmatprep.subr.mxu0 0.0
        %967 = vmatpush1.msra.mxu0 %v901
        %968 = vmatprep.subr.mxu0 0.0
        %969 = vmatpush1.msra.mxu0 %v902
        %970 = vmatprep.subr.mxu0 0.0
        %971 = vmatpush1.msra.mxu0 %v903
        %972 = vmatprep.subr.mxu0 0.0
        %973 = vmatpush1.msra.mxu0 %v904
        %974 = vmatprep.subr.mxu0 0.0
        %975 = vmatpush1.msra.mxu0 %v905
        %976 = vmatprep.subr.mxu0 0.0
        %977 = vmatpush1.msra.mxu0 %v906
        %978 = vmatprep.subr.mxu0 0.0
        %979 = vmatpush1.msra.mxu0 %v907
        %980 = vmatprep.subr.mxu0 0.0
        %981 = vmatpush1.msra.mxu0 %v908
        %982 = vmatprep.subr.mxu0 0.0
        %983 = vmatpush1.msra.mxu0 %v909
        %984 = vmatprep.subr.mxu0 0.0
        %985 = vmatpush1.msra.mxu0 %v910
        %986 = vmatprep.subr.mxu0 0.0
        %987 = vmatpush1.msra.mxu0 %v911
        %988 = vmatprep.subr.mxu0 0.0
        %989 = vmatpush1.msra.mxu0 %v912
        %990 = vmatprep.subr.mxu0 0.0
        %991 = vmatpush1.msra.mxu0 %v913
        %992 = vmatprep.subr.mxu0 0.0
        %993 = vmatpush1.msra.mxu0 %v914
        %994 = vmatprep.subr.mxu0 0.0
        %995 = vmatpush1.msra.mxu0 %v915
        %996 = vmatprep.subr.mxu0 0.0
        %997 = vmatpush1.msra.mxu0 %v916
        %998 = vmatprep.subr.mxu0 0.0
        %999 = vmatpush1.msra.mxu0 %v917
        %1000 = vmatprep.subr.mxu0 0.0
        %1001 = vmatpush1.msra.mxu0 %v918
        %1002 = vmatprep.subr.mxu0 0.0
        %1003 = vmatpush1.msra.mxu0 %v919
        %1004 = vmatprep.subr.mxu0 0.0
        %1005 = vmatpush1.msra.mxu0 %v920
        %1006 = vmatprep.subr.mxu0 0.0
        %1007 = vmatpush1.msra.mxu0 %v921
        %1008 = vmatprep.subr.mxu0 0.0
        %1009 = vmatpush1.msra.mxu0 %v922
        %1010 = vmatprep.subr.mxu0 0.0
        %1011 = vmatpush1.msra.mxu0 %v923
        %1012 = vmatprep.mubr.f32.mxu0 %v878
        %1013 = vmatmul.mubr.f32.gmra.mrb[0].mxu0 %v890
        %v1014 = vpop.f32.mrb[0].mxu0
        %v1015 = vpop.f32.mrb[0].mxu0
        %1016 = vmatprep.mubr.f32.mxu0 %v879
        %1017 = vmatmul.mubr.f32.gmra.mrb[0].mxu0 %v889
        %v1018 = vpop.f32.mrb[0].mxu0
        %v1019 = vadd.f32 %v946, %v1018
        %v1020 = vpop.f32.mrb[0].mxu0
        %1021 = vmatprep.mubr.f32.mxu0 %v880
        %1022 = vmatmul.mubr.f32.gmra.mrb[0].mxu0 %v888
        %v1023 = vpop.f32.mrb[0].mxu0
        %v1024 = vadd.f32 %v946, %v1023
        %v1025 = vpop.f32.mrb[0].mxu0
        %1026 = vmatprep.mubr.f32.mxu0 %v881
        %1027 = vmatmul.mubr.f32.gmra.mrb[0].mxu0 %v887
        %v1028 = vpop.f32.mrb[0].mxu0
        %v1029 = vpop.f32.mrb[0].mxu0
        %1030 = vdwg.mxu0
        %1031 = vmatprep.subr.mxu0 0.0
        %1032 = vmatpush1.msra.mxu0 %v924
        %1033 = vmatprep.subr.mxu0 0.0
        %1034 = vmatpush1.msra.mxu0 %v925
        %1035 = vmatprep.subr.mxu0 0.0
        %1036 = vmatpush1.msra.mxu0 %v926
        %1037 = vmatprep.subr.mxu0 0.0
        %1038 = vmatpush1.msra.mxu0 %v927
        %1039 = vmatprep.subr.mxu0 0.0
        %1040 = vmatpush1.msra.mxu0 %v928
        %1041 = vmatprep.subr.mxu0 0.0
        %1042 = vmatpush1.msra.mxu0 %v929
        %1043 = vmatprep.subr.mxu0 0.0
        %1044 = vmatpush1.msra.mxu0 %v930
        %1045 = vmatprep.subr.mxu0 0.0
        %1046 = vmatpush1.msra.mxu0 %v931
        %1047 = vmatprep.subr.mxu0 0.0
        %1048 = vmatpush1.msra.mxu0 %v932
        %1049 = vmatprep.subr.mxu0 0.0
        %1050 = vmatpush1.msra.mxu0 %v933
        %1051 = vmatprep.subr.mxu0 0.0
        %1052 = vmatpush1.msra.mxu0 %v934
        %1053 = vmatprep.subr.mxu0 0.0
        %1054 = vmatpush1.msra.mxu0 %v935
        %1055 = vmatprep.subr.mxu0 0.0
        %1056 = vmatpush1.msra.mxu0 %v936
        %1057 = vmatprep.subr.mxu0 0.0
        %1058 = vmatpush1.msra.mxu0 %v937
        %1059 = vmatprep.subr.mxu0 0.0
        %1060 = vmatpush1.msra.mxu0 %v938
        %1061 = vmatprep.subr.mxu0 0.0
        %1062 = vmatpush1.msra.mxu0 %v939
        %1063 = vmatprep.subr.mxu0 0.0
        %1064 = vmatpush1.msra.mxu0 0.0
        %1065 = vmatprep.subr.mxu0 0.0
        %1066 = vmatpush1.msra.mxu0 0.0
        %1067 = vmatprep.subr.mxu0 0.0
        %1068 = vmatpush1.msra.mxu0 0.0
        %1069 = vmatprep.subr.mxu0 0.0
        %1070 = vmatpush1.msra.mxu0 0.0
        %1071 = vmatprep.subr.mxu0 0.0
        %1072 = vmatpush1.msra.mxu0 0.0
        %1073 = vmatprep.subr.mxu0 0.0
        %1074 = vmatpush1.msra.mxu0 0.0
        %1075 = vmatprep.subr.mxu0 0.0
        %1076 = vmatpush1.msra.mxu0 0.0
        %1077 = vmatprep.subr.mxu0 0.0
        %1078 = vmatpush1.msra.mxu0 0.0
        %1079 = vmatprep.subr.mxu0 0.0
        %1080 = vmatpush1.msra.mxu0 0.0
        %1081 = vmatprep.subr.mxu0 0.0
        %1082 = vmatpush1.msra.mxu0 0.0
        %1083 = vmatprep.subr.mxu0 0.0
        %1084 = vmatpush1.msra.mxu0 0.0
        %1085 = vmatprep.subr.mxu0 0.0
        %1086 = vmatpush1.msra.mxu0 0.0
        %1087 = vmatprep.subr.mxu0 0.0
        %1088 = vmatpush1.msra.mxu0 0.0
        %1089 = vmatprep.subr.mxu0 0.0
        %1090 = vmatpush1.msra.mxu0 0.0
        %1091 = vmatprep.subr.mxu0 0.0
        %1092 = vmatpush1.msra.mxu0 0.0
        %1093 = vmatprep.subr.mxu0 0.0
        %1094 = vmatpush1.msra.mxu0 0.0
        %1095 = vmatprep.mubr.f32.mxu0 0.0
        %1096 = vmatmul.mubr.f32.gmra.mrb[0].mxu0 %v889
        %v1097 = vpop.f32.mrb[0].mxu0
        %v1098 = vpop.f32.mrb[0].mxu0
        %1099 = vmatprep.mubr.f32.mxu0 0.0
        %1100 = vmatmul.mubr.f32.gmra.mrb[0].mxu0 %v888
        %v1101 = vpop.f32.mrb[0].mxu0
        %v1102 = vadd.f32 %v1019, %v1101
        %v1103 = vpop.f32.mrb[0].mxu0
        %1104 = vmatprep.mubr.f32.mxu0 0.0
        %1105 = vmatmul.mubr.f32.gmra.mrb[0].mxu0 %v887
        %v1106 = vpop.f32.mrb[0].mxu0
        %v1107 = vadd.f32 %v1024, %v1106
        %v1108 = vpop.f32.mrb[0].mxu0
        %1109 = vmatprep.mubr.f32.mxu0 0.0
        %1110 = vmatmul.mubr.f32.gmra.mrb[0].mxu0 %v890
        %v1111 = vpop.f32.mrb[0].mxu0
        %v1112 = vpop.f32.mrb[0].mxu0
        %1113 = vdwg.mxu0
        %v1114 = vmax.f32 %v1102, 0.0
        %v1115 = vmax.f32 %v1107, 0.0
        %1116 = vst [vmem:[%s229] sm:$0xff] %v1114
        %1117 = vst [vmem:[%s229 + $0x8] sm:$0xff] %v1115
        %s1118 = sand.u32 %s132, 1
        %s1119 = scalar_lea.sflag [#allocation6], %s1118
        %s1120 = sand.u32 %s132, 1
        %s1121 = smul.addr %s1120, 16
        %s1122 = scalar_lea.vmem [#allocation7], %s1121
        // Predicated region
        $region41: #{tpu_custom_call.1} parent=35 // pred_check
          %p1123 = pneg %p142
        $region42: #{tpu_custom_call.1} parent=35 // pred_check_branch
          %1125 = sbr.rel (%p1123) target = $region44
        $region43: #{tpu_custom_call.1} parent=35 // pred_region
          %s1126 = smul.u32 2, %s24
          %s1128 = ssub.s32 256, 256
          %1129 = vsyncadd %s1119, %s1128
          %s1130 = smul.addr %s23, 2
          %s1131 = sadd.s32 %s1126, %s1130
          %s1132 = smul.addr %s1131, 128
          %s1133 = scalar_lea.hbm %s4, %s1132
          %s1134 = sshll.u32 %s1122, 4
          %s1135 = int_to_ptr.vmem [resolvable:$true] %s1134
          %1140 = dma.vmem_to_hbm [thread:$0]  %s1135, 256, %s1133, %s1119, 128, 128, 8
        $region44: #{tpu_custom_call.1} parent=35 // pred_fallthru
          _
      $region36: #{tpu_custom_call.1} parent=5 // pred_fallthru
        _
      %p1141 = scmp.le.s32.totalorder 2, %s14
      // Predicated region
      $region45: #{tpu_custom_call.1} parent=5 // pred_check
        %p1142 = pneg %p1141
      $region46: #{tpu_custom_call.1} parent=5 // pred_check_branch
        %1144 = sbr.rel (%p1142) target = $region48
      $region47: #{tpu_custom_call.1} parent=5 // pred_region
        %s1145 = ssub.s32 %s14, 2
        // Predicated region
        $region49: #{tpu_custom_call.1} parent=47 // pred_check
          %p1146 = pneg %p148
        $region50: #{tpu_custom_call.1} parent=47 // pred_check_branch
          %1148 = sbr.rel (%p1146) target = $region52
        $region51: #{tpu_custom_call.1} parent=47 // pred_region
          %s1149 = sand.u32 %s133, 1
          %s1150 = scalar_lea.sflag [#allocation6], %s1149
          %s1151 = sand.u32 %s133, 1
          %s1152 = smul.addr %s1151, 16
          %s1153 = scalar_lea.vmem [#allocation7], %s1152
          %1154 = dma.done %s1150, 256
        $region52: #{tpu_custom_call.1} parent=47 // pred_fallthru
          _
      $region48: #{tpu_custom_call.1} parent=5 // pred_fallthru
        _
    $region6: #{tpu_custom_call.1} parent=1 // loop_footer
      %s18 = sadd.s32 1, %s14
    $region7: #{tpu_custom_call.1} parent=1 // loop_footer_branch
      %13 = sbr.rel target = $region3
    $region8: #{tpu_custom_call.1} parent=1 // loop_exit
      _
    %1155 = vsyncpa [#allocation5], 1
    %s1156 = scalar_lea.sflag [#allocation5], 1
    %1157 = vsyncpa %s1156, 1
    %1158 = vsyncpa [#allocation6], 1
    %s1159 = scalar_lea.sflag [#allocation6], 1
    %1160 = vsyncpa %s1159, 1

</llo_original>
